<compile_context>
chip_gen: v5e
topology: v5e:2x2
jax: 0.10.0
libtpu: 0.0.40
codegen_flags: <defaults>
</compile_context>

<pallas_src>
import jax
import jax.numpy as jnp
from jax import lax
from jax.experimental import pallas as pl
from jax.experimental.pallas import tpu as pltpu


# ----------------------------- kernel ----------------------------------------

def _decoder_layer_kernel(skip_ref, hfeat_ref, m1_ref, sh1_ref, m2_ref, sh2_ref,
                          skipout_ref, feat_ref, xpad_ref, fpad_ref):
    # skip_ref:  (bb, H, W*Cs) f32     hfeat_ref: (bb, H, W*Ch) f32
    # m1_ref:    (3, W*Cin, W*Cout)    sh1_ref:   (1, W*Cout) f32
    # m2_ref:    (3, W*Cout, W*Cout)   sh2_ref:   (1, W*Cout) f32
    # skipout_ref / feat_ref: (bb, H, W*Cout)
    # xpad_ref:  (H+2, W*Cin) bf16     fpad_ref:  (H+2, W*Cout) bf16   [VMEM scratch]
    bb, H, WCs = skip_ref.shape
    WCh = hfeat_ref.shape[2]
    WCin = WCs + WCh
    WCo = sh1_ref.shape[1]
    mxu_dtype = m1_ref.dtype

    # Zero only the two halo rows; kw-direction zero padding is encoded in the band
    # matrices and the interior rows are fully overwritten for every image below.
    # Done every grid step (never gated on program_id) -> megacore-safe.
    xpad_ref[pl.ds(0, 1), :] = jnp.zeros((1, WCin), mxu_dtype)
    xpad_ref[pl.ds(H + 1, 1), :] = jnp.zeros((1, WCin), mxu_dtype)
    fpad_ref[pl.ds(0, 1), :] = jnp.zeros((1, WCo), mxu_dtype)
    fpad_ref[pl.ds(H + 1, 1), :] = jnp.zeros((1, WCo), mxu_dtype)

    for i in range(bb):                      # static unroll over images in this step
        # ---- conv1: channel concat == adjacent lane blocks of the scratch ----
        skip_i = skip_ref[i]                                   # (H, W*Cs) f32
        xpad_ref[pl.ds(1, H), pl.ds(0, WCs)] = skip_i.astype(mxu_dtype)
        xpad_ref[pl.ds(1, H), pl.ds(WCs, WCh)] = hfeat_ref[i].astype(mxu_dtype)

        y1 = jnp.zeros((H, WCo), jnp.float32)
        for kh in range(3):                   # 3 accumulating MXU matmuls, K = W*Cin
            y1 = y1 + jnp.dot(xpad_ref[pl.ds(kh, H), :], m1_ref[kh],
                              preferred_element_type=jnp.float32)
        feat1 = jnp.maximum(y1 + sh1_ref[...], 0.0)           # lane-dense f32 epilogue

        # residual: skip_out = skipfeat + feat1
        skipout_ref[i] = (skip_i + feat1).astype(skipout_ref.dtype)

        # ---- conv2 on feat1, kept resident in VMEM (no HBM round-trip) ----
        fpad_ref[pl.ds(1, H), :] = feat1.astype(mxu_dtype)
        y2 = jnp.zeros((H, WCo), jnp.float32)
        for kh in range(3):
            y2 = y2 + jnp.dot(fpad_ref[pl.ds(kh, H), :], m2_ref[kh],
                              preferred_element_type=jnp.float32)
        feat_ref[i] = jnp.maximum(y2 + sh2_ref[...], 0.0).astype(feat_ref.dtype)


# ----------------------------- wrapper ----------------------------------------

def _fold_bn(w33, bias, gamma, beta, mean, var, eps=1e-5):
    """Fold eval-mode BN (+ conv bias) into the conv weights.
    Returns scaled (3,3,Cin,Cout) weights and a per-channel shift (Cout,)."""
    scale = gamma / jnp.sqrt(var + eps)
    shift = beta + scale * (bias - mean)
    return w33 * scale, shift.astype(jnp.float32)


def _band_matrices(w_scaled, W):
    """(3,3,C,Cout) scaled conv weights -> (3, W*C, W*Cout) block-banded matrices.

    out[kh][(w+kw-1)*C + ci, w*Cout + co] == w_scaled[kh, kw, ci, co]; taps that fall
    outside [0, W) are omitted, which implements the left/right SAME padding.
    The conv then becomes   y[h] = sum_kh rowpad(x)[h+kh] @ out[kh].
    """
    _, _, C, Cout = w_scaled.shape
    mats = []
    for kh in range(3):
        m = jnp.zeros((W * C, W * Cout), w_scaled.dtype)
        for kw in range(3):
            S = jnp.eye(W, k=1 - kw, dtype=w_scaled.dtype)   # ones at (w+kw-1, w)
            m = m + jnp.kron(S, w_scaled[kh, kw])
        mats.append(m)
    return jnp.stack(mats)


def _pick_batch_block(B):
    """Whole batch per step on 1-TC chips (v5e/v6e); 2-way split on v7x (2 TCs)."""
    try:
        kind = jax.devices()[0].device_kind.lower()
    except Exception:
        kind = ""
    if "v7" in kind and B % 2 == 0:
        return B // 2
    return B


def decoder_layer(skipfeat, hfeat, params, *, compute_dtype=jnp.bfloat16,
                  batch_block=None):
    """NHWC version of decoderlayer.forward. Returns (skipfeat_out, feat) in NHWC."""
    B, H, W, Cs = skipfeat.shape
    Bh, Hh, Wh, Ch = hfeat.shape
    assert (B, H, W) == (Bh, Hh, Wh)
    Cin = Cs + Ch
    Cout = params["w1"].shape[-1]
    assert Cs == Cout, "residual add requires skipfeat channels == oupchannel"

    if batch_block is None:
        batch_block = _pick_batch_block(B)
    assert B % batch_block == 0
    steps = B // batch_block

    # Fold BN+bias, build banded matmul weights (kw taps + SAME padding encoded).
    w1s, shift1 = _fold_bn(params["w1"], params["b1"], params["g1"],
                           params["be1"], params["m1"], params["v1"])
    w2s, shift2 = _fold_bn(params["w2"], params["b2"], params["g2"],
                           params["be2"], params["m2"], params["v2"])
    # conv1 input channel split (skip first, then hfeat — matches torch.cat order),
    # stacked along K so the in-kernel "concat" is just two adjacent lane blocks.
    m1 = jnp.concatenate([_band_matrices(w1s[:, :, :Cs, :], W),
                          _band_matrices(w1s[:, :, Cs:, :], W)], axis=1)
    m2 = _band_matrices(w2s, W)
    m1 = m1.astype(compute_dtype)           # bf16 MXU feeds; accumulation stays f32
    m2 = m2.astype(compute_dtype)
    sh1 = jnp.tile(shift1, W).reshape(1, W * Cout)     # pre-tiled lane-dense shifts
    sh2 = jnp.tile(shift2, W).reshape(1, W * Cout)

    # Lane-flattened activations (B, H, W*C); at this size W*Cout = 128 lanes.
    skip_flat = skipfeat.reshape(B, H, W * Cs)
    hfeat_flat = hfeat.reshape(B, H, W * Ch)
    # TODO(synk): for bandwidth-bound production sizes (esp. v5e) pass the activations
    #             and outputs across the pallas boundary as bf16 (f32 math stays inside).

    out_sds = jax.ShapeDtypeStruct((B, H, W * Cout), skipfeat.dtype)
    skip_out, feat = pl.pallas_call(
        _decoder_layer_kernel,
        out_shape=(out_sds, out_sds),
        grid=(steps,),
        in_specs=[
            pl.BlockSpec((batch_block, H, W * Cs), lambda b: (b, 0, 0)),
            pl.BlockSpec((batch_block, H, W * Ch), lambda b: (b, 0, 0)),
            pl.BlockSpec((3, W * Cin, W * Cout), lambda b: (0, 0, 0)),
            pl.BlockSpec((1, W * Cout), lambda b: (0, 0)),
            pl.BlockSpec((3, W * Cout, W * Cout), lambda b: (0, 0, 0)),
            pl.BlockSpec((1, W * Cout), lambda b: (0, 0)),
        ],
        out_specs=(
            pl.BlockSpec((batch_block, H, W * Cout), lambda b: (b, 0, 0)),
            pl.BlockSpec((batch_block, H, W * Cout), lambda b: (b, 0, 0)),
        ),
        scratch_shapes=[
            pltpu.VMEM((H + 2, W * Cin), compute_dtype),    # row-padded concat input
            pltpu.VMEM((H + 2, W * Cout), compute_dtype),   # row-padded feat1
        ],
        compiler_params=pltpu.CompilerParams(
            dimension_semantics=("parallel",)),
    )(skip_flat, hfeat_flat, m1, sh1, m2, sh2)
    # TODO(synk): for production spatial sizes add H-row-band tiling (1-row halo, band
    #             height a multiple of 8) and re-derive the band-matrix/im2col choice
    #             plus VMEM budget against v7x's 64 MiB (32 MiB scoped default); the
    #             band-matrix trick grows flops ~W/3 so it is only for small W.

    return skip_out.reshape(B, H, W, Cout), feat.reshape(B, H, W, Cout)


# ----------------------------- reference (plain JAX) --------------------------

def _ref_conv_bn_relu(x, w33, b, g, be, m, v, eps=1e-5):
    y = lax.conv_general_dilated(x, w33, window_strides=(1, 1), padding="SAME",
                                 dimension_numbers=("NHWC", "HWIO", "NHWC"),
                                 precision=lax.Precision.HIGHEST)
    y = y + b
    y = (y - m) / jnp.sqrt(v + eps) * g + be
    return jnp.maximum(y, 0.0)


def _ref_decoder_layer(skipfeat, hfeat, p):
    x = jnp.concatenate([skipfeat, hfeat], axis=-1)
    f1 = _ref_conv_bn_relu(x, p["w1"], p["b1"], p["g1"], p["be1"], p["m1"], p["v1"])
    skip_out = skipfeat + f1
    f2 = _ref_conv_bn_relu(f1, p["w2"], p["b2"], p["g2"], p["be2"], p["m2"], p["v2"])
    return skip_out, f2


# ----------------------------- main -------------------------------------------

if __name__ == "__main__":
    B, H, W = 2, 16, 16
    Cs = 8          # skipfeat channels == oupchannel (required by residual add)
    Ch = 8          # hfeat channels
    Cin = Cs + Ch   # inpchannel
    Cout = Cs       # oupchannel

    key = jax.random.PRNGKey(0)
    ks = jax.random.split(key, 14)

    skipfeat = jax.random.normal(ks[0], (B, H, W, Cs), jnp.float32)
    hfeat = jax.random.normal(ks[1], (B, H, W, Ch), jnp.float32)

    params = {
        "w1": jax.random.normal(ks[2], (3, 3, Cin, Cout), jnp.float32) * 0.1,
        "b1": jax.random.normal(ks[3], (Cout,), jnp.float32) * 0.1,
        "g1": 1.0 + 0.1 * jax.random.normal(ks[4], (Cout,), jnp.float32),
        "be1": 0.1 * jax.random.normal(ks[5], (Cout,), jnp.float32),
        "m1": 0.1 * jax.random.normal(ks[6], (Cout,), jnp.float32),
        "v1": jax.random.uniform(ks[7], (Cout,), jnp.float32, minval=0.5, maxval=1.5),
        "w2": jax.random.normal(ks[8], (3, 3, Cout, Cout), jnp.float32) * 0.1,
        "b2": jax.random.normal(ks[9], (Cout,), jnp.float32) * 0.1,
        "g2": 1.0 + 0.1 * jax.random.normal(ks[10], (Cout,), jnp.float32),
        "be2": 0.1 * jax.random.normal(ks[11], (Cout,), jnp.float32),
        "m2": 0.1 * jax.random.normal(ks[12], (Cout,), jnp.float32),
        "v2": jax.random.uniform(ks[13], (Cout,), jnp.float32, minval=0.5, maxval=1.5),
    }

    skip_out, feat = jax.jit(decoder_layer)(skipfeat, hfeat, params)
    jax.block_until_ready((skip_out, feat))

    ref_skip, ref_feat = _ref_decoder_layer(skipfeat, hfeat, params)
    # bf16 MXU feeds with f32 accumulation -> tolerance loosened vs a pure-f32 path.
    assert jnp.allclose(skip_out, ref_skip, atol=5e-2, rtol=5e-2)
    assert jnp.allclose(feat, ref_feat, atol=5e-2, rtol=5e-2)

    print("KERNEL_OK")
</pallas_src>

<mosaic_0001>
module attributes {stable_mosaic.version = 11 : i64} {
  func.func @_decoder_layer_kernel(%arg0: i32, %arg1: memref<2x16x128xf32, #tpu.memory_space<vmem>>, %arg2: memref<2x16x128xf32, #tpu.memory_space<vmem>>, %arg3: memref<3x256x128xbf16, #tpu.memory_space<vmem>>, %arg4: memref<1x128xf32, #tpu.memory_space<vmem>>, %arg5: memref<3x128x128xbf16, #tpu.memory_space<vmem>>, %arg6: memref<1x128xf32, #tpu.memory_space<vmem>>, %arg7: memref<2x16x128xf32, #tpu.memory_space<vmem>>, %arg8: memref<2x16x128xf32, #tpu.memory_space<vmem>>, %arg9: memref<18x256xbf16, #tpu.memory_space<vmem>>, %arg10: memref<18x128xbf16, #tpu.memory_space<vmem>>) attributes {dimension_semantics = [#tpu.dimension_semantics<parallel>], iteration_bounds = array<i64: 1>, scalar_prefetch = 0 : i64, scratch_operands = 2 : i64, tpu.core_type = #tpu.core_type<tc>, window_params = [{transform_indices = @transform_0, window_bounds = array<i64: 2, 16, 128>}, {transform_indices = @transform_1, window_bounds = array<i64: 2, 16, 128>}, {pipeline_mode = #tpu.pipeline_mode<synchronous>, transform_indices = @transform_2, window_bounds = array<i64: 3, 256, 128>}, {pipeline_mode = #tpu.pipeline_mode<synchronous>, transform_indices = @transform_3, window_bounds = array<i64: 1, 128>}, {pipeline_mode = #tpu.pipeline_mode<synchronous>, transform_indices = @transform_4, window_bounds = array<i64: 3, 128, 128>}, {pipeline_mode = #tpu.pipeline_mode<synchronous>, transform_indices = @transform_5, window_bounds = array<i64: 1, 128>}, {transform_indices = @transform_6, window_bounds = array<i64: 2, 16, 128>}, {transform_indices = @transform_7, window_bounds = array<i64: 2, 16, 128>}]} {
    %cst = arith.constant 0.000000e+00 : bf16
    %0 = vector.broadcast %cst : bf16 to vector<1x256xbf16>
    %c0 = arith.constant 0 : index
    %c0_0 = arith.constant 0 : index
    %1 = vector.load %arg9[%c0, %c0_0] : memref<18x256xbf16, #tpu.memory_space<vmem>>, vector<1x256xbf16>
    tpu.vector_store %arg9[%c0, %c0_0], %0 {strides = array<i32>} : memref<18x256xbf16, #tpu.memory_space<vmem>>, vector<1x256xbf16>,
    %cst_1 = arith.constant 0.000000e+00 : bf16
    %2 = vector.broadcast %cst_1 : bf16 to vector<1x256xbf16>
    %c17 = arith.constant 17 : index
    %c0_2 = arith.constant 0 : index
    %3 = vector.load %arg9[%c17, %c0_2] : memref<18x256xbf16, #tpu.memory_space<vmem>>, vector<1x256xbf16>
    tpu.vector_store %arg9[%c17, %c0_2], %2 {strides = array<i32>} : memref<18x256xbf16, #tpu.memory_space<vmem>>, vector<1x256xbf16>,
    %cst_3 = arith.constant 0.000000e+00 : bf16
    %4 = vector.broadcast %cst_3 : bf16 to vector<1x128xbf16>
    %c0_4 = arith.constant 0 : index
    %c0_5 = arith.constant 0 : index
    %5 = vector.load %arg10[%c0_4, %c0_5] : memref<18x128xbf16, #tpu.memory_space<vmem>>, vector<1x128xbf16>
    tpu.vector_store %arg10[%c0_4, %c0_5], %4 {strides = array<i32>} : memref<18x128xbf16, #tpu.memory_space<vmem>>, vector<1x128xbf16>,
    %cst_6 = arith.constant 0.000000e+00 : bf16
    %6 = vector.broadcast %cst_6 : bf16 to vector<1x128xbf16>
    %c17_7 = arith.constant 17 : index
    %c0_8 = arith.constant 0 : index
    %7 = vector.load %arg10[%c17_7, %c0_8] : memref<18x128xbf16, #tpu.memory_space<vmem>>, vector<1x128xbf16>
    tpu.vector_store %arg10[%c17_7, %c0_8], %6 {strides = array<i32>} : memref<18x128xbf16, #tpu.memory_space<vmem>>, vector<1x128xbf16>,
    %c0_9 = arith.constant 0 : index
    %c0_10 = arith.constant 0 : index
    %c0_11 = arith.constant 0 : index
    %8 = vector.load %arg1[%c0_9, %c0_10, %c0_11] : memref<2x16x128xf32, #tpu.memory_space<vmem>>, vector<1x16x128xf32>
    %9 = vector.shape_cast %8 : vector<1x16x128xf32> to vector<16x128xf32>
    %10 = arith.truncf %9 : vector<16x128xf32> to vector<16x128xbf16>
    %c1 = arith.constant 1 : index
    %c0_12 = arith.constant 0 : index
    %11 = vector.load %arg9[%c1, %c0_12] : memref<18x256xbf16, #tpu.memory_space<vmem>>, vector<16x128xbf16>
    tpu.vector_store %arg9[%c1, %c0_12], %10 {strides = array<i32>} : memref<18x256xbf16, #tpu.memory_space<vmem>>, vector<16x128xbf16>,
    %c0_13 = arith.constant 0 : index
    %c0_14 = arith.constant 0 : index
    %c0_15 = arith.constant 0 : index
    %12 = vector.load %arg2[%c0_13, %c0_14, %c0_15] : memref<2x16x128xf32, #tpu.memory_space<vmem>>, vector<1x16x128xf32>
    %13 = vector.shape_cast %12 : vector<1x16x128xf32> to vector<16x128xf32>
    %14 = arith.truncf %13 : vector<16x128xf32> to vector<16x128xbf16>
    %c1_16 = arith.constant 1 : index
    %c128 = arith.constant 128 : index
    %15 = vector.load %arg9[%c1_16, %c128] : memref<18x256xbf16, #tpu.memory_space<vmem>>, vector<16x128xbf16>
    tpu.vector_store %arg9[%c1_16, %c128], %14 {strides = array<i32>} : memref<18x256xbf16, #tpu.memory_space<vmem>>, vector<16x128xbf16>,
    %cst_17 = arith.constant 0.000000e+00 : f32
    %16 = vector.broadcast %cst_17 : f32 to vector<16x128xf32>
    %c0_18 = arith.constant 0 : index
    %c0_19 = arith.constant 0 : index
    %17 = vector.load %arg9[%c0_18, %c0_19] : memref<18x256xbf16, #tpu.memory_space<vmem>>, vector<16x256xbf16>
    %c0_20 = arith.constant 0 : index
    %c0_21 = arith.constant 0 : index
    %c0_22 = arith.constant 0 : index
    %18 = vector.load %arg3[%c0_20, %c0_21, %c0_22] : memref<3x256x128xbf16, #tpu.memory_space<vmem>>, vector<1x256x128xbf16>
    %19 = vector.shape_cast %18 : vector<1x256x128xbf16> to vector<256x128xbf16>
    %cst_23 = arith.constant dense<0.000000e+00> : vector<16x128xf32>
    %20 = tpu.matmul %17, %19, %cst_23 {dimension_numbers = #tpu.dot_dimension_numbers<[1], [0], [0], [1], [0, 0, 1, 1], [], []>} : vector<16x256xbf16>, vector<256x128xbf16>, vector<16x128xf32> -> vector<16x128xf32>
    %21 = arith.addf %16, %20 : vector<16x128xf32>
    %c1_24 = arith.constant 1 : index
    %c0_25 = arith.constant 0 : index
    %22 = vector.load %arg9[%c1_24, %c0_25] : memref<18x256xbf16, #tpu.memory_space<vmem>>, vector<16x256xbf16>
    %c1_26 = arith.constant 1 : index
    %c0_27 = arith.constant 0 : index
    %c0_28 = arith.constant 0 : index
    %23 = vector.load %arg3[%c1_26, %c0_27, %c0_28] : memref<3x256x128xbf16, #tpu.memory_space<vmem>>, vector<1x256x128xbf16>
    %24 = vector.shape_cast %23 : vector<1x256x128xbf16> to vector<256x128xbf16>
    %cst_29 = arith.constant dense<0.000000e+00> : vector<16x128xf32>
    %25 = tpu.matmul %22, %24, %cst_29 {dimension_numbers = #tpu.dot_dimension_numbers<[1], [0], [0], [1], [0, 0, 1, 1], [], []>} : vector<16x256xbf16>, vector<256x128xbf16>, vector<16x128xf32> -> vector<16x128xf32>
    %26 = arith.addf %21, %25 : vector<16x128xf32>
    %c2 = arith.constant 2 : index
    %c0_30 = arith.constant 0 : index
    %27 = vector.load %arg9[%c2, %c0_30] : memref<18x256xbf16, #tpu.memory_space<vmem>>, vector<16x256xbf16>
    %c2_31 = arith.constant 2 : index
    %c0_32 = arith.constant 0 : index
    %c0_33 = arith.constant 0 : index
    %28 = vector.load %arg3[%c2_31, %c0_32, %c0_33] : memref<3x256x128xbf16, #tpu.memory_space<vmem>>, vector<1x256x128xbf16>
    %29 = vector.shape_cast %28 : vector<1x256x128xbf16> to vector<256x128xbf16>
    %cst_34 = arith.constant dense<0.000000e+00> : vector<16x128xf32>
    %30 = tpu.matmul %27, %29, %cst_34 {dimension_numbers = #tpu.dot_dimension_numbers<[1], [0], [0], [1], [0, 0, 1, 1], [], []>} : vector<16x256xbf16>, vector<256x128xbf16>, vector<16x128xf32> -> vector<16x128xf32>
    %31 = arith.addf %26, %30 : vector<16x128xf32>
    %c0_35 = arith.constant 0 : index
    %c0_36 = arith.constant 0 : index
    %32 = vector.load %arg4[%c0_35, %c0_36] : memref<1x128xf32, #tpu.memory_space<vmem>>, vector<1x128xf32>
    %33 = vector.broadcast %32 : vector<1x128xf32> to vector<16x128xf32>
    %34 = arith.addf %31, %33 : vector<16x128xf32>
    %cst_37 = arith.constant 0.000000e+00 : f32
    %35 = vector.broadcast %cst_37 : f32 to vector<16x128xf32>
    %36 = arith.maximumf %34, %35 : vector<16x128xf32>
    %37 = arith.addf %9, %36 : vector<16x128xf32>
    %c0_38 = arith.constant 0 : index
    %c0_39 = arith.constant 0 : index
    %c0_40 = arith.constant 0 : index
    %38 = vector.load %arg7[%c0_38, %c0_39, %c0_40] : memref<2x16x128xf32, #tpu.memory_space<vmem>>, vector<1x16x128xf32>
    %39 = vector.shape_cast %38 : vector<1x16x128xf32> to vector<16x128xf32>
    %40 = vector.shape_cast %37 : vector<16x128xf32> to vector<1x16x128xf32>
    tpu.vector_store %arg7[%c0_38, %c0_39, %c0_40], %40 {strides = array<i32>} : memref<2x16x128xf32, #tpu.memory_space<vmem>>, vector<1x16x128xf32>,
    %41 = arith.truncf %36 : vector<16x128xf32> to vector<16x128xbf16>
    %c1_41 = arith.constant 1 : index
    %c0_42 = arith.constant 0 : index
    %42 = vector.load %arg10[%c1_41, %c0_42] : memref<18x128xbf16, #tpu.memory_space<vmem>>, vector<16x128xbf16>
    tpu.vector_store %arg10[%c1_41, %c0_42], %41 {strides = array<i32>} : memref<18x128xbf16, #tpu.memory_space<vmem>>, vector<16x128xbf16>,
    %cst_43 = arith.constant 0.000000e+00 : f32
    %43 = vector.broadcast %cst_43 : f32 to vector<16x128xf32>
    %c0_44 = arith.constant 0 : index
    %c0_45 = arith.constant 0 : index
    %44 = vector.load %arg10[%c0_44, %c0_45] : memref<18x128xbf16, #tpu.memory_space<vmem>>, vector<16x128xbf16>
    %c0_46 = arith.constant 0 : index
    %c0_47 = arith.constant 0 : index
    %c0_48 = arith.constant 0 : index
    %45 = vector.load %arg5[%c0_46, %c0_47, %c0_48] : memref<3x128x128xbf16, #tpu.memory_space<vmem>>, vector<1x128x128xbf16>
    %46 = vector.shape_cast %45 : vector<1x128x128xbf16> to vector<128x128xbf16>
    %cst_49 = arith.constant dense<0.000000e+00> : vector<16x128xf32>
    %47 = tpu.matmul %44, %46, %cst_49 {dimension_numbers = #tpu.dot_dimension_numbers<[1], [0], [0], [1], [0, 0, 1, 1], [], []>} : vector<16x128xbf16>, vector<128x128xbf16>, vector<16x128xf32> -> vector<16x128xf32>
    %48 = arith.addf %43, %47 : vector<16x128xf32>
    %c1_50 = arith.constant 1 : index
    %c0_51 = arith.constant 0 : index
    %49 = vector.load %arg10[%c1_50, %c0_51] : memref<18x128xbf16, #tpu.memory_space<vmem>>, vector<16x128xbf16>
    %c1_52 = arith.constant 1 : index
    %c0_53 = arith.constant 0 : index
    %c0_54 = arith.constant 0 : index
    %50 = vector.load %arg5[%c1_52, %c0_53, %c0_54] : memref<3x128x128xbf16, #tpu.memory_space<vmem>>, vector<1x128x128xbf16>
    %51 = vector.shape_cast %50 : vector<1x128x128xbf16> to vector<128x128xbf16>
    %cst_55 = arith.constant dense<0.000000e+00> : vector<16x128xf32>
    %52 = tpu.matmul %49, %51, %cst_55 {dimension_numbers = #tpu.dot_dimension_numbers<[1], [0], [0], [1], [0, 0, 1, 1], [], []>} : vector<16x128xbf16>, vector<128x128xbf16>, vector<16x128xf32> -> vector<16x128xf32>
    %53 = arith.addf %48, %52 : vector<16x128xf32>
    %c2_56 = arith.constant 2 : index
    %c0_57 = arith.constant 0 : index
    %54 = vector.load %arg10[%c2_56, %c0_57] : memref<18x128xbf16, #tpu.memory_space<vmem>>, vector<16x128xbf16>
    %c2_58 = arith.constant 2 : index
    %c0_59 = arith.constant 0 : index
    %c0_60 = arith.constant 0 : index
    %55 = vector.load %arg5[%c2_58, %c0_59, %c0_60] : memref<3x128x128xbf16, #tpu.memory_space<vmem>>, vector<1x128x128xbf16>
    %56 = vector.shape_cast %55 : vector<1x128x128xbf16> to vector<128x128xbf16>
    %cst_61 = arith.constant dense<0.000000e+00> : vector<16x128xf32>
    %57 = tpu.matmul %54, %56, %cst_61 {dimension_numbers = #tpu.dot_dimension_numbers<[1], [0], [0], [1], [0, 0, 1, 1], [], []>} : vector<16x128xbf16>, vector<128x128xbf16>, vector<16x128xf32> -> vector<16x128xf32>
    %58 = arith.addf %53, %57 : vector<16x128xf32>
    %c0_62 = arith.constant 0 : index
    %c0_63 = arith.constant 0 : index
    %59 = vector.load %arg6[%c0_62, %c0_63] : memref<1x128xf32, #tpu.memory_space<vmem>>, vector<1x128xf32>
    %60 = vector.broadcast %59 : vector<1x128xf32> to vector<16x128xf32>
    %61 = arith.addf %58, %60 : vector<16x128xf32>
    %cst_64 = arith.constant 0.000000e+00 : f32
    %62 = vector.broadcast %cst_64 : f32 to vector<16x128xf32>
    %63 = arith.maximumf %61, %62 : vector<16x128xf32>
    %c0_65 = arith.constant 0 : index
    %c0_66 = arith.constant 0 : index
    %c0_67 = arith.constant 0 : index
    %64 = vector.load %arg8[%c0_65, %c0_66, %c0_67] : memref<2x16x128xf32, #tpu.memory_space<vmem>>, vector<1x16x128xf32>
    %65 = vector.shape_cast %64 : vector<1x16x128xf32> to vector<16x128xf32>
    %66 = vector.shape_cast %63 : vector<16x128xf32> to vector<1x16x128xf32>
    tpu.vector_store %arg8[%c0_65, %c0_66, %c0_67], %66 {strides = array<i32>} : memref<2x16x128xf32, #tpu.memory_space<vmem>>, vector<1x16x128xf32>,
    %c1_68 = arith.constant 1 : index
    %c0_69 = arith.constant 0 : index
    %c0_70 = arith.constant 0 : index
    %67 = vector.load %arg1[%c1_68, %c0_69, %c0_70] : memref<2x16x128xf32, #tpu.memory_space<vmem>>, vector<1x16x128xf32>
    %68 = vector.shape_cast %67 : vector<1x16x128xf32> to vector<16x128xf32>
    %69 = arith.truncf %68 : vector<16x128xf32> to vector<16x128xbf16>
    %c1_71 = arith.constant 1 : index
    %c0_72 = arith.constant 0 : index
    %70 = vector.load %arg9[%c1_71, %c0_72] : memref<18x256xbf16, #tpu.memory_space<vmem>>, vector<16x128xbf16>
    tpu.vector_store %arg9[%c1_71, %c0_72], %69 {strides = array<i32>} : memref<18x256xbf16, #tpu.memory_space<vmem>>, vector<16x128xbf16>,
    %c1_73 = arith.constant 1 : index
    %c0_74 = arith.constant 0 : index
    %c0_75 = arith.constant 0 : index
    %71 = vector.load %arg2[%c1_73, %c0_74, %c0_75] : memref<2x16x128xf32, #tpu.memory_space<vmem>>, vector<1x16x128xf32>
    %72 = vector.shape_cast %71 : vector<1x16x128xf32> to vector<16x128xf32>
    %73 = arith.truncf %72 : vector<16x128xf32> to vector<16x128xbf16>
    %c1_76 = arith.constant 1 : index
    %c128_77 = arith.constant 128 : index
    %74 = vector.load %arg9[%c1_76, %c128_77] : memref<18x256xbf16, #tpu.memory_space<vmem>>, vector<16x128xbf16>
    tpu.vector_store %arg9[%c1_76, %c128_77], %73 {strides = array<i32>} : memref<18x256xbf16, #tpu.memory_space<vmem>>, vector<16x128xbf16>,
    %cst_78 = arith.constant 0.000000e+00 : f32
    %75 = vector.broadcast %cst_78 : f32 to vector<16x128xf32>
    %c0_79 = arith.constant 0 : index
    %c0_80 = arith.constant 0 : index
    %76 = vector.load %arg9[%c0_79, %c0_80] : memref<18x256xbf16, #tpu.memory_space<vmem>>, vector<16x256xbf16>
    %c0_81 = arith.constant 0 : index
    %c0_82 = arith.constant 0 : index
    %c0_83 = arith.constant 0 : index
    %77 = vector.load %arg3[%c0_81, %c0_82, %c0_83] : memref<3x256x128xbf16, #tpu.memory_space<vmem>>, vector<1x256x128xbf16>
    %78 = vector.shape_cast %77 : vector<1x256x128xbf16> to vector<256x128xbf16>
    %cst_84 = arith.constant dense<0.000000e+00> : vector<16x128xf32>
    %79 = tpu.matmul %76, %78, %cst_84 {dimension_numbers = #tpu.dot_dimension_numbers<[1], [0], [0], [1], [0, 0, 1, 1], [], []>} : vector<16x256xbf16>, vector<256x128xbf16>, vector<16x128xf32> -> vector<16x128xf32>
    %80 = arith.addf %75, %79 : vector<16x128xf32>
    %c1_85 = arith.constant 1 : index
    %c0_86 = arith.constant 0 : index
    %81 = vector.load %arg9[%c1_85, %c0_86] : memref<18x256xbf16, #tpu.memory_space<vmem>>, vector<16x256xbf16>
    %c1_87 = arith.constant 1 : index
    %c0_88 = arith.constant 0 : index
    %c0_89 = arith.constant 0 : index
    %82 = vector.load %arg3[%c1_87, %c0_88, %c0_89] : memref<3x256x128xbf16, #tpu.memory_space<vmem>>, vector<1x256x128xbf16>
    %83 = vector.shape_cast %82 : vector<1x256x128xbf16> to vector<256x128xbf16>
    %cst_90 = arith.constant dense<0.000000e+00> : vector<16x128xf32>
    %84 = tpu.matmul %81, %83, %cst_90 {dimension_numbers = #tpu.dot_dimension_numbers<[1], [0], [0], [1], [0, 0, 1, 1], [], []>} : vector<16x256xbf16>, vector<256x128xbf16>, vector<16x128xf32> -> vector<16x128xf32>
    %85 = arith.addf %80, %84 : vector<16x128xf32>
    %c2_91 = arith.constant 2 : index
    %c0_92 = arith.constant 0 : index
    %86 = vector.load %arg9[%c2_91, %c0_92] : memref<18x256xbf16, #tpu.memory_space<vmem>>, vector<16x256xbf16>
    %c2_93 = arith.constant 2 : index
    %c0_94 = arith.constant 0 : index
    %c0_95 = arith.constant 0 : index
    %87 = vector.load %arg3[%c2_93, %c0_94, %c0_95] : memref<3x256x128xbf16, #tpu.memory_space<vmem>>, vector<1x256x128xbf16>
    %88 = vector.shape_cast %87 : vector<1x256x128xbf16> to vector<256x128xbf16>
    %cst_96 = arith.constant dense<0.000000e+00> : vector<16x128xf32>
    %89 = tpu.matmul %86, %88, %cst_96 {dimension_numbers = #tpu.dot_dimension_numbers<[1], [0], [0], [1], [0, 0, 1, 1], [], []>} : vector<16x256xbf16>, vector<256x128xbf16>, vector<16x128xf32> -> vector<16x128xf32>
    %90 = arith.addf %85, %89 : vector<16x128xf32>
    %c0_97 = arith.constant 0 : index
    %c0_98 = arith.constant 0 : index
    %91 = vector.load %arg4[%c0_97, %c0_98] : memref<1x128xf32, #tpu.memory_space<vmem>>, vector<1x128xf32>
    %92 = vector.broadcast %91 : vector<1x128xf32> to vector<16x128xf32>
    %93 = arith.addf %90, %92 : vector<16x128xf32>
    %cst_99 = arith.constant 0.000000e+00 : f32
    %94 = vector.broadcast %cst_99 : f32 to vector<16x128xf32>
    %95 = arith.maximumf %93, %94 : vector<16x128xf32>
    %96 = arith.addf %68, %95 : vector<16x128xf32>
    %c1_100 = arith.constant 1 : index
    %c0_101 = arith.constant 0 : index
    %c0_102 = arith.constant 0 : index
    %97 = vector.load %arg7[%c1_100, %c0_101, %c0_102] : memref<2x16x128xf32, #tpu.memory_space<vmem>>, vector<1x16x128xf32>
    %98 = vector.shape_cast %97 : vector<1x16x128xf32> to vector<16x128xf32>
    %99 = vector.shape_cast %96 : vector<16x128xf32> to vector<1x16x128xf32>
    tpu.vector_store %arg7[%c1_100, %c0_101, %c0_102], %99 {strides = array<i32>} : memref<2x16x128xf32, #tpu.memory_space<vmem>>, vector<1x16x128xf32>,
    %100 = arith.truncf %95 : vector<16x128xf32> to vector<16x128xbf16>
    %c1_103 = arith.constant 1 : index
    %c0_104 = arith.constant 0 : index
    %101 = vector.load %arg10[%c1_103, %c0_104] : memref<18x128xbf16, #tpu.memory_space<vmem>>, vector<16x128xbf16>
    tpu.vector_store %arg10[%c1_103, %c0_104], %100 {strides = array<i32>} : memref<18x128xbf16, #tpu.memory_space<vmem>>, vector<16x128xbf16>,
    %cst_105 = arith.constant 0.000000e+00 : f32
    %102 = vector.broadcast %cst_105 : f32 to vector<16x128xf32>
    %c0_106 = arith.constant 0 : index
    %c0_107 = arith.constant 0 : index
    %103 = vector.load %arg10[%c0_106, %c0_107] : memref<18x128xbf16, #tpu.memory_space<vmem>>, vector<16x128xbf16>
    %c0_108 = arith.constant 0 : index
    %c0_109 = arith.constant 0 : index
    %c0_110 = arith.constant 0 : index
    %104 = vector.load %arg5[%c0_108, %c0_109, %c0_110] : memref<3x128x128xbf16, #tpu.memory_space<vmem>>, vector<1x128x128xbf16>
    %105 = vector.shape_cast %104 : vector<1x128x128xbf16> to vector<128x128xbf16>
    %cst_111 = arith.constant dense<0.000000e+00> : vector<16x128xf32>
    %106 = tpu.matmul %103, %105, %cst_111 {dimension_numbers = #tpu.dot_dimension_numbers<[1], [0], [0], [1], [0, 0, 1, 1], [], []>} : vector<16x128xbf16>, vector<128x128xbf16>, vector<16x128xf32> -> vector<16x128xf32>
    %107 = arith.addf %102, %106 : vector<16x128xf32>
    %c1_112 = arith.constant 1 : index
    %c0_113 = arith.constant 0 : index
    %108 = vector.load %arg10[%c1_112, %c0_113] : memref<18x128xbf16, #tpu.memory_space<vmem>>, vector<16x128xbf16>
    %c1_114 = arith.constant 1 : index
    %c0_115 = arith.constant 0 : index
    %c0_116 = arith.constant 0 : index
    %109 = vector.load %arg5[%c1_114, %c0_115, %c0_116] : memref<3x128x128xbf16, #tpu.memory_space<vmem>>, vector<1x128x128xbf16>
    %110 = vector.shape_cast %109 : vector<1x128x128xbf16> to vector<128x128xbf16>
    %cst_117 = arith.constant dense<0.000000e+00> : vector<16x128xf32>
    %111 = tpu.matmul %108, %110, %cst_117 {dimension_numbers = #tpu.dot_dimension_numbers<[1], [0], [0], [1], [0, 0, 1, 1], [], []>} : vector<16x128xbf16>, vector<128x128xbf16>, vector<16x128xf32> -> vector<16x128xf32>
    %112 = arith.addf %107, %111 : vector<16x128xf32>
    %c2_118 = arith.constant 2 : index
    %c0_119 = arith.constant 0 : index
    %113 = vector.load %arg10[%c2_118, %c0_119] : memref<18x128xbf16, #tpu.memory_space<vmem>>, vector<16x128xbf16>
    %c2_120 = arith.constant 2 : index
    %c0_121 = arith.constant 0 : index
    %c0_122 = arith.constant 0 : index
    %114 = vector.load %arg5[%c2_120, %c0_121, %c0_122] : memref<3x128x128xbf16, #tpu.memory_space<vmem>>, vector<1x128x128xbf16>
    %115 = vector.shape_cast %114 : vector<1x128x128xbf16> to vector<128x128xbf16>
    %cst_123 = arith.constant dense<0.000000e+00> : vector<16x128xf32>
    %116 = tpu.matmul %113, %115, %cst_123 {dimension_numbers = #tpu.dot_dimension_numbers<[1], [0], [0], [1], [0, 0, 1, 1], [], []>} : vector<16x128xbf16>, vector<128x128xbf16>, vector<16x128xf32> -> vector<16x128xf32>
    %117 = arith.addf %112, %116 : vector<16x128xf32>
    %c0_124 = arith.constant 0 : index
    %c0_125 = arith.constant 0 : index
    %118 = vector.load %arg6[%c0_124, %c0_125] : memref<1x128xf32, #tpu.memory_space<vmem>>, vector<1x128xf32>
    %119 = vector.broadcast %118 : vector<1x128xf32> to vector<16x128xf32>
    %120 = arith.addf %117, %119 : vector<16x128xf32>
    %cst_126 = arith.constant 0.000000e+00 : f32
    %121 = vector.broadcast %cst_126 : f32 to vector<16x128xf32>
    %122 = arith.maximumf %120, %121 : vector<16x128xf32>
    %c1_127 = arith.constant 1 : index
    %c0_128 = arith.constant 0 : index
    %c0_129 = arith.constant 0 : index
    %123 = vector.load %arg8[%c1_127, %c0_128, %c0_129] : memref<2x16x128xf32, #tpu.memory_space<vmem>>, vector<1x16x128xf32>
    %124 = vector.shape_cast %123 : vector<1x16x128xf32> to vector<16x128xf32>
    %125 = vector.shape_cast %122 : vector<16x128xf32> to vector<1x16x128xf32>
    tpu.vector_store %arg8[%c1_127, %c0_128, %c0_129], %125 {strides = array<i32>} : memref<2x16x128xf32, #tpu.memory_space<vmem>>, vector<1x16x128xf32>,
    return
  }
  func.func @transform_0(%arg0: i32) -> (i32, i32, i32) {
    %c0_i32 = arith.constant 0 : i32
    %c0_i32_0 = arith.constant 0 : i32
    %c0_i32_1 = arith.constant 0 : i32
    return %arg0, %c0_i32, %c0_i32_0 : i32, i32, i32
  }
  func.func @transform_1(%arg0: i32) -> (i32, i32, i32) {
    %c0_i32 = arith.constant 0 : i32
    %c0_i32_0 = arith.constant 0 : i32
    %c0_i32_1 = arith.constant 0 : i32
    return %arg0, %c0_i32, %c0_i32_0 : i32, i32, i32
  }
  func.func @transform_2(%arg0: i32) -> (i32, i32, i32) {
    %c0_i32 = arith.constant 0 : i32
    %c0_i32_0 = arith.constant 0 : i32
    %c0_i32_1 = arith.constant 0 : i32
    %c0_i32_2 = arith.constant 0 : i32
    return %c0_i32, %c0_i32_0, %c0_i32_1 : i32, i32, i32
  }
  func.func @transform_3(%arg0: i32) -> (i32, i32) {
    %c0_i32 = arith.constant 0 : i32
    %c0_i32_0 = arith.constant 0 : i32
    %c0_i32_1 = arith.constant 0 : i32
    return %c0_i32, %c0_i32_0 : i32, i32
  }
  func.func @transform_4(%arg0: i32) -> (i32, i32, i32) {
    %c0_i32 = arith.constant 0 : i32
    %c0_i32_0 = arith.constant 0 : i32
    %c0_i32_1 = arith.constant 0 : i32
    %c0_i32_2 = arith.constant 0 : i32
    return %c0_i32, %c0_i32_0, %c0_i32_1 : i32, i32, i32
  }
  func.func @transform_5(%arg0: i32) -> (i32, i32) {
    %c0_i32 = arith.constant 0 : i32
    %c0_i32_0 = arith.constant 0 : i32
    %c0_i32_1 = arith.constant 0 : i32
    return %c0_i32, %c0_i32_0 : i32, i32
  }
  func.func @transform_6(%arg0: i32) -> (i32, i32, i32) {
    %c0_i32 = arith.constant 0 : i32
    %c0_i32_0 = arith.constant 0 : i32
    %c0_i32_1 = arith.constant 0 : i32
    return %arg0, %c0_i32, %c0_i32_0 : i32, i32, i32
  }
  func.func @transform_7(%arg0: i32) -> (i32, i32, i32) {
    %c0_i32 = arith.constant 0 : i32
    %c0_i32_0 = arith.constant 0 : i32
    %c0_i32_1 = arith.constant 0 : i32
    return %arg0, %c0_i32, %c0_i32_0 : i32, i32, i32
  }
}

</mosaic_0001>

<llo_original>
// kernel: tile.18
$region0: #{tile.18}
  #allocation0 [shape = 's32[1]{0}', space=sflag, size = 0x4, scoped, tag = 'scoped memory for tile.18']
  %s0 = inlined_call_operand.vmem [shape: f32[8], index: 0, kind: input, shape index: {}]
  %s1 = inlined_call_operand.vmem [shape: f32[16,8], index: 1, kind: output, shape index: {}]
  // Predicated region
  $region2: #{tile.18} parent=0 // pred_check
    _
  $region3: #{tile.18} parent=0 // pred_check_branch
    %3 = sbr.rel (0) target = $region5
  $region4: #{tile.18} parent=0 // pred_region
    _
  $region5: #{tile.18} parent=0 // pred_fallthru
    _
  %v4 = vld [vmem:[%s0] ss:$0 sm:$0xff]
  %5 = vst [vmem:[%s1] sm:$0xff] %v4
  %s6 = scalar_lea.vmem %s1, 8
  %7 = vst [vmem:[%s6] sm:$0xff] %v4

// kernel: tile.19
$region0: #{tile.19}
  %s0 = inlined_call_operand.vmem [shape: f32[16,8], index: 0, kind: input, shape index: {}]
  %s1 = inlined_call_operand.vmem [shape: f32[1,128], index: 1, kind: output, shape index: {}]
  $region1: #{tile.19} parent=0
    #allocation0 [shape = 'u8[4096]{0}', space=vmem, size = 0x1000, scoped, tag = 'scoped mem for output reshape']
    %v2 = vld [vmem:[%s0] sm:$0x1]
    %vm3 = vcmask 64512
    %4 = vst.msk [vmem:[#allocation0] sm:$0x1] %vm3, %v2
    %s5 = scalar_lea.vmem %s0, 15
    %v6 = vld [vmem:[%s5] sm:$0x1]
    %7 = vrot.lane.b32.xlu0 %v6, 120
    %v8 = vpop.permute.xlu0 %7
    %vm9 = vcmask 1048512
    %10 = vst.msk [vmem:[#allocation0] sm:$0x1] %vm9, %v8
    %s11 = scalar_lea.vmem %s0, 14
    %v12 = vld [vmem:[%s11] sm:$0x1]
    %13 = vrot.lane.b32.xlu0 %v12, 112
    %v14 = vpop.permute.xlu0 %13
    %vm15 = vcmask 982912
    %16 = vst.msk [vmem:[#allocation0] sm:$0x1] %vm15, %v14
    %s17 = scalar_lea.vmem %s0, 13
    %v18 = vld [vmem:[%s17] sm:$0x1]
    %19 = vrot.lane.b32.xlu0 %v18, 104
    %v20 = vpop.permute.xlu0 %19
    %vm21 = vcmask 917312
    %22 = vst.msk [vmem:[#allocation0] sm:$0x1] %vm21, %v20
    %s23 = scalar_lea.vmem %s0, 12
    %v24 = vld [vmem:[%s23] sm:$0x1]
    %25 = vrot.lane.b32.xlu0 %v24, 96
    %v26 = vpop.permute.xlu0 %25
    %vm27 = vcmask 851712
    %28 = vst.msk [vmem:[#allocation0] sm:$0x1] %vm27, %v26
    %s29 = scalar_lea.vmem %s0, 11
    %v30 = vld [vmem:[%s29] sm:$0x1]
    %31 = vrot.lane.b32.xlu0 %v30, 88
    %v32 = vpop.permute.xlu0 %31
    %vm33 = vcmask 786112
    %34 = vst.msk [vmem:[#allocation0] sm:$0x1] %vm33, %v32
    %s35 = scalar_lea.vmem %s0, 10
    %v36 = vld [vmem:[%s35] sm:$0x1]
    %37 = vrot.lane.b32.xlu0 %v36, 80
    %v38 = vpop.permute.xlu0 %37
    %vm39 = vcmask 720512
    %40 = vst.msk [vmem:[#allocation0] sm:$0x1] %vm39, %v38
    %s41 = scalar_lea.vmem %s0, 9
    %v42 = vld [vmem:[%s41] sm:$0x1]
    %43 = vrot.lane.b32.xlu0 %v42, 72
    %v44 = vpop.permute.xlu0 %43
    %vm45 = vcmask 654912
    %46 = vst.msk [vmem:[#allocation0] sm:$0x1] %vm45, %v44
    %s47 = scalar_lea.vmem %s0, 8
    %v48 = vld [vmem:[%s47] sm:$0x1]
    %49 = vrot.lane.b32.xlu0 %v48, 64
    %v50 = vpop.permute.xlu0 %49
    %vm51 = vcmask 589312
    %52 = vst.msk [vmem:[#allocation0] sm:$0x1] %vm51, %v50
    %s53 = scalar_lea.vmem %s0, 7
    %v54 = vld [vmem:[%s53] sm:$0x1]
    %55 = vrot.lane.b32.xlu0 %v54, 56
    %v56 = vpop.permute.xlu0 %55
    %vm57 = vcmask 523712
    %58 = vst.msk [vmem:[#allocation0] sm:$0x1] %vm57, %v56
    %s59 = scalar_lea.vmem %s0, 6
    %v60 = vld [vmem:[%s59] sm:$0x1]
    %61 = vrot.lane.b32.xlu0 %v60, 48
    %v62 = vpop.permute.xlu0 %61
    %vm63 = vcmask 458112
    %64 = vst.msk [vmem:[#allocation0] sm:$0x1] %vm63, %v62
    %s65 = scalar_lea.vmem %s0, 5
    %v66 = vld [vmem:[%s65] sm:$0x1]
    %67 = vrot.lane.b32.xlu0 %v66, 40
    %v68 = vpop.permute.xlu0 %67
    %vm69 = vcmask 392512
    %70 = vst.msk [vmem:[#allocation0] sm:$0x1] %vm69, %v68
    %s71 = scalar_lea.vmem %s0, 4
    %v72 = vld [vmem:[%s71] sm:$0x1]
    %73 = vrot.lane.b32.xlu0 %v72, 32
    %v74 = vpop.permute.xlu0 %73
    %vm75 = vcmask 326912
    %76 = vst.msk [vmem:[#allocation0] sm:$0x1] %vm75, %v74
    %s77 = scalar_lea.vmem %s0, 3
    %v78 = vld [vmem:[%s77] sm:$0x1]
    %79 = vrot.lane.b32.xlu0 %v78, 24
    %v80 = vpop.permute.xlu0 %79
    %vm81 = vcmask 261312
    %82 = vst.msk [vmem:[#allocation0] sm:$0x1] %vm81, %v80
    %s83 = scalar_lea.vmem %s0, 2
    %v84 = vld [vmem:[%s83] sm:$0x1]
    %85 = vrot.lane.b32.xlu0 %v84, 16
    %v86 = vpop.permute.xlu0 %85
    %vm87 = vcmask 195712
    %88 = vst.msk [vmem:[#allocation0] sm:$0x1] %vm87, %v86
    %s89 = scalar_lea.vmem %s0, 1
    %v90 = vld [vmem:[%s89] sm:$0x1]
    %91 = vrot.lane.b32.xlu0 %v90, 8
    %v92 = vpop.permute.xlu0 %91
    %vm93 = vcmask 130112
    %94 = vst.msk [vmem:[#allocation0] sm:$0x1] %vm93, %v92
    %s96 = ssub.s32 2, 1
    %v97 = vld [vmem:[#allocation0] sm:%s96]
    %s99 = ssub.s32 2, 1
    %100 = vst [vmem:[%s1] sm:%s99] %v97

// kernel: decoder_layer.1
$region0: #{decoder_layer.1}
  #allocation0 [shape = 'u32[]', space=smem, size = 0x4, offset = 0x4, fixed_abs, tag = 'smem constant byte address 0x4 - core index']
  #allocation1 [shape = 'u32[72,128]{1,0:T(1,128)}', space=vmem, size = 0x9000, scoped, tag = 'internal scratch']
  #allocation2 [shape = 'bf16[18,256]{1,0:T(8,128)(2,1)}', space=vmem, size = 0x3000, scoped, tag = 'scratch operand']
  #allocation3 [shape = 'bf16[18,128]{1,0:T(8,128)(2,1)}', space=vmem, size = 0x1800, scoped, tag = 'scratch operand']
  %s0 = inlined_call_operand.vmem [shape: f32[2,16,128], index: 0, kind: input, shape index: {}]
  %s1 = inlined_call_operand.vmem [shape: f32[2,16,128], index: 1, kind: input, shape index: {}]
  %s2 = inlined_call_operand.vmem [shape: bf16[3,256,128], index: 2, kind: input, shape index: {}]
  %s3 = inlined_call_operand.vmem [shape: f32[1,128], index: 3, kind: input, shape index: {}]
  %s4 = inlined_call_operand.vmem [shape: bf16[3,128,128], index: 4, kind: input, shape index: {}]
  %s5 = inlined_call_operand.vmem [shape: f32[1,128], index: 5, kind: input, shape index: {}]
  %s6 = inlined_call_operand.vmem [shape: f32[2,16,128], index: 6, kind: output, shape index: {0}]
  %s7 = inlined_call_operand.vmem [shape: f32[2,16,128], index: 7, kind: output, shape index: {1}]
  %8 = xla_tuple %s6, %s7
  %s9 = sld [smem:[#allocation0]]
  $region42: #{decoder_layer.1} parent=0
    _
  %s11 = ssub.s32 1, %s9
  %s12 = scalar_select 0, %s11, %s9
  // Predicated region
  $region2: #{decoder_layer.1} parent=0 // pred_check
    _
  $region3: #{decoder_layer.1} parent=0 // pred_check_branch
    %14 = sbr.rel (0) target = $region5
  $region4: #{decoder_layer.1} parent=0 // pred_region
    _
  $region5: #{decoder_layer.1} parent=0 // pred_fallthru
    _
  // Predicated region
  $region6: #{decoder_layer.1} parent=0 // pred_check
    _
  $region7: #{decoder_layer.1} parent=0 // pred_check_branch
    %16 = sbr.rel (0) target = $region9
  $region8: #{decoder_layer.1} parent=0 // pred_region
    _
  $region9: #{decoder_layer.1} parent=0 // pred_fallthru
    _
  // Predicated region
  $region10: #{decoder_layer.1} parent=0 // pred_check
    _
  $region11: #{decoder_layer.1} parent=0 // pred_check_branch
    %18 = sbr.rel (0) target = $region13
  $region12: #{decoder_layer.1} parent=0 // pred_region
    _
  $region13: #{decoder_layer.1} parent=0 // pred_fallthru
    _
  // Predicated region
  $region14: #{decoder_layer.1} parent=0 // pred_check
    _
  $region15: #{decoder_layer.1} parent=0 // pred_check_branch
    %20 = sbr.rel (0) target = $region17
  $region16: #{decoder_layer.1} parent=0 // pred_region
    _
  $region17: #{decoder_layer.1} parent=0 // pred_fallthru
    _
  // Predicated region
  $region18: #{decoder_layer.1} parent=0 // pred_check
    _
  $region19: #{decoder_layer.1} parent=0 // pred_check_branch
    %22 = sbr.rel (0) target = $region21
  $region20: #{decoder_layer.1} parent=0 // pred_region
    _
  $region21: #{decoder_layer.1} parent=0 // pred_fallthru
    _
  // Predicated region
  $region22: #{decoder_layer.1} parent=0 // pred_check
    _
  $region23: #{decoder_layer.1} parent=0 // pred_check_branch
    %24 = sbr.rel (0) target = $region25
  $region24: #{decoder_layer.1} parent=0 // pred_region
    _
  $region25: #{decoder_layer.1} parent=0 // pred_fallthru
    _
  %vm26 = vcmask 1040384
  %vm27 = vsmask.f32 256
  %vm28 = vmand %vm26, %vm27
  %vm29 = vcmask 1044484
  %vm30 = vsmask.f32 4352
  %vm31 = vmand %vm29, %vm30
  %vm32 = vmor %vm31, %vm28
  %v33 = vld [vmem:[#allocation2] sm:$0x11]
  %v34 = vsel %vm32, 0, %v33
  %35 = vst [vmem:[#allocation2] sm:$0x11] %v34
  %vm36 = vsmask.f32 7938
  %vm37 = vmand %vm26, %vm36
  %vm38 = vsmask.f32 7954
  %vm39 = vmand %vm29, %vm38
  %vm40 = vmor %vm39, %vm37
  %v41 = vld [vmem:[#allocation2 + $0x10] sm:$0x11]
  %v42 = vsel %vm40, 0, %v41
  %43 = vst [vmem:[#allocation2 + $0x10] sm:$0x11] %v42
  %v44 = vld [vmem:[#allocation3] sm:$0x1]
  %v45 = vsel %vm28, 0, %v44
  %46 = vst [vmem:[#allocation3] sm:$0x1] %v45
  %v47 = vld [vmem:[#allocation3 + $0x8] sm:$0x1]
  %v48 = vsel %vm37, 0, %v47
  %49 = vst [vmem:[#allocation3 + $0x8] sm:$0x1] %v48
  %v50 = vld [vmem:[%s0] sm:$0xff]
  %v51 = vld [vmem:[%s0 + $0x8] sm:$0xff]
  %v52 = vpack.c.bf16 %v50, %v50
  %v53 = vpack.c.bf16 %v51, %v51
  %vm54 = vsmask.f32 4368
  %vm55 = vmor %vm27, %vm54
  %v57 = vshrl.u32 %v52, 16
  %v59 = vrot.slane %v57, 7
  %v60 = vshll.u32 %v52, 16
  %v62 = vor.u32 %v59, %v60
  %v63 = vrot.slane %v59, 4
  %v65 = vshrl.u32 %v53, 16
  %v67 = vrot.slane %v65, 7
  %v68 = vshll.u32 %v53, 16
  %v70 = vor.u32 %v67, %v68
  %v71 = vsel %vm55, %v63, %v70
  %v72 = vrot.slane %v67, 4
  %vm76 = vcmask 1043456
  %vm77 = vmand %vm76, %vm36
  %v78 = vld [vmem:[#allocation2] sm:$0xf]
  %v79 = vsel %vm77, %v62, %v78
  %80 = vst [vmem:[#allocation2] sm:$0xf] %v79
  %81 = vst [vmem:[#allocation2 + $0x8] sm:$0xf] %v71
  %v82 = vld [vmem:[#allocation2 + $0x10] sm:$0x1]
  %v83 = vsel %vm28, %v72, %v82
  %84 = vst [vmem:[#allocation2 + $0x10] sm:$0x1] %v83
  %v85 = vld [vmem:[%s1] sm:$0xff]
  %v86 = vld [vmem:[%s1 + $0x8] sm:$0xff]
  %v87 = vpack.c.bf16 %v85, %v85
  %v88 = vpack.c.bf16 %v86, %v86
  %v90 = vshrl.u32 %v87, 16
  %v92 = vrot.slane %v90, 7
  %v93 = vshll.u32 %v87, 16
  %v95 = vor.u32 %v92, %v93
  %v96 = vrot.slane %v92, 4
  %v98 = vshrl.u32 %v88, 16
  %v100 = vrot.slane %v98, 7
  %v101 = vshll.u32 %v88, 16
  %v103 = vor.u32 %v100, %v101
  %v104 = vsel %vm55, %v96, %v103
  %v105 = vrot.slane %v100, 4
  %v109 = vld [vmem:[#allocation2 + $0x4] sm:$0xf]
  %v110 = vsel %vm77, %v95, %v109
  %111 = vst [vmem:[#allocation2 + $0x4] sm:$0xf] %v110
  %112 = vst [vmem:[#allocation2 + $0xc] sm:$0xf] %v104
  %v113 = vld [vmem:[#allocation2 + $0x14] sm:$0x1]
  %v114 = vsel %vm28, %v105, %v113
  %115 = vst [vmem:[#allocation2 + $0x14] sm:$0x1] %v114
  %v116 = vld [vmem:[#allocation2] sm:$0xff]
  %v117 = vld [vmem:[#allocation2 + $0x8] sm:$0xff]
  %v118 = vld [vmem:[%s2] sm:$0xf]
  %v119 = vld [vmem:[%s2 + $0x4] sm:$0xf]
  %v120 = vld [vmem:[%s2 + $0x8] sm:$0xf]
  %v121 = vld [vmem:[%s2 + $0xc] sm:$0xf]
  %v122 = vld [vmem:[%s2 + $0x10] sm:$0xf]
  %v123 = vld [vmem:[%s2 + $0x14] sm:$0xf]
  %v124 = vld [vmem:[%s2 + $0x18] sm:$0xf]
  %v125 = vld [vmem:[%s2 + $0x1c] sm:$0xf]
  %v126 = vld [vmem:[%s2 + $0x20] sm:$0xf]
  %v127 = vld [vmem:[%s2 + $0x24] sm:$0xf]
  %v128 = vld [vmem:[%s2 + $0x28] sm:$0xf]
  %v129 = vld [vmem:[%s2 + $0x2c] sm:$0xf]
  %v130 = vld [vmem:[%s2 + $0x30] sm:$0xf]
  %v131 = vld [vmem:[%s2 + $0x34] sm:$0xf]
  %v132 = vld [vmem:[%s2 + $0x38] sm:$0xf]
  %v133 = vld [vmem:[%s2 + $0x3c] sm:$0xf]
  %v134 = vld [vmem:[%s2 + $0x40] sm:$0xf]
  %v135 = vld [vmem:[%s2 + $0x44] sm:$0xf]
  %v136 = vld [vmem:[%s2 + $0x48] sm:$0xf]
  %v137 = vld [vmem:[%s2 + $0x4c] sm:$0xf]
  %v138 = vld [vmem:[%s2 + $0x50] sm:$0xf]
  %v139 = vld [vmem:[%s2 + $0x54] sm:$0xf]
  %v140 = vld [vmem:[%s2 + $0x58] sm:$0xf]
  %v141 = vld [vmem:[%s2 + $0x5c] sm:$0xf]
  %v142 = vld [vmem:[%s2 + $0x60] sm:$0xf]
  %v143 = vld [vmem:[%s2 + $0x64] sm:$0xf]
  %v144 = vld [vmem:[%s2 + $0x68] sm:$0xf]
  %v145 = vld [vmem:[%s2 + $0x6c] sm:$0xf]
  %v146 = vld [vmem:[%s2 + $0x70] sm:$0xf]
  %v147 = vld [vmem:[%s2 + $0x74] sm:$0xf]
  %v148 = vld [vmem:[%s2 + $0x78] sm:$0xf]
  %v149 = vld [vmem:[%s2 + $0x7c] sm:$0xf]
  %v150 = vld [vmem:[#allocation2 + $0x10] sm:$0x11]
  %s151 = scalar_lea.vmem %s2, 128
  %v152 = vld [vmem:[%s151] sm:$0xf]
  %v153 = vld [vmem:[%s151 + $0x4] sm:$0xf]
  %v154 = vld [vmem:[%s151 + $0x8] sm:$0xf]
  %v155 = vld [vmem:[%s151 + $0xc] sm:$0xf]
  %v156 = vld [vmem:[%s151 + $0x10] sm:$0xf]
  %v157 = vld [vmem:[%s151 + $0x14] sm:$0xf]
  %v158 = vld [vmem:[%s151 + $0x18] sm:$0xf]
  %v159 = vld [vmem:[%s151 + $0x1c] sm:$0xf]
  %v160 = vld [vmem:[%s151 + $0x20] sm:$0xf]
  %v161 = vld [vmem:[%s151 + $0x24] sm:$0xf]
  %v162 = vld [vmem:[%s151 + $0x28] sm:$0xf]
  %v163 = vld [vmem:[%s151 + $0x2c] sm:$0xf]
  %v164 = vld [vmem:[%s151 + $0x30] sm:$0xf]
  %v165 = vld [vmem:[%s151 + $0x34] sm:$0xf]
  %v166 = vld [vmem:[%s151 + $0x38] sm:$0xf]
  %v167 = vld [vmem:[%s151 + $0x3c] sm:$0xf]
  %v168 = vld [vmem:[%s151 + $0x40] sm:$0xf]
  %v169 = vld [vmem:[%s151 + $0x44] sm:$0xf]
  %v170 = vld [vmem:[%s151 + $0x48] sm:$0xf]
  %v171 = vld [vmem:[%s151 + $0x4c] sm:$0xf]
  %v172 = vld [vmem:[%s151 + $0x50] sm:$0xf]
  %v173 = vld [vmem:[%s151 + $0x54] sm:$0xf]
  %v174 = vld [vmem:[%s151 + $0x58] sm:$0xf]
  %v175 = vld [vmem:[%s151 + $0x5c] sm:$0xf]
  %v176 = vld [vmem:[%s151 + $0x60] sm:$0xf]
  %v177 = vld [vmem:[%s151 + $0x64] sm:$0xf]
  %v178 = vld [vmem:[%s151 + $0x68] sm:$0xf]
  %v179 = vld [vmem:[%s151 + $0x6c] sm:$0xf]
  %v180 = vld [vmem:[%s151 + $0x70] sm:$0xf]
  %v181 = vld [vmem:[%s151 + $0x74] sm:$0xf]
  %v182 = vld [vmem:[%s151 + $0x78] sm:$0xf]
  %v183 = vld [vmem:[%s151 + $0x7c] sm:$0xf]
  %v187 = vunpack.c.l.b16 %v116
  %v188 = vunpack.c.h.b16 %v116
  %v189 = vunpack.c.l.b16 %v117
  %v190 = vunpack.c.h.b16 %v117
  %v191 = vunpack.c.l.b16 %v150
  %v192 = vunpack.c.h.b16 %v150
  %v193 = vpack.c.b16 %v189, %v187
  %v194 = vpack.c.b16 %v190, %v188
  %v195 = vpack.c.b16 %v191, %v191
  %v196 = vpack.c.b16 %v192, %v192
  %vm197 = vsmask.f32 7424
  %v199 = vshrl.u32 %v193, 16
  %v201 = vshll.u32 %v193, 16
  %v203 = vrot.slane %v201, 1
  %v204 = vor.u32 %v199, %v203
  %v206 = vshll.u32 %v195, 16
  %v208 = vrot.slane %v206, 1
  %v209 = vsel %vm197, %v204, %v208
  %v211 = vshrl.u32 %v194, 16
  %v213 = vshll.u32 %v194, 16
  %v215 = vrot.slane %v213, 1
  %v216 = vor.u32 %v211, %v215
  %v218 = vshll.u32 %v196, 16
  %v220 = vrot.slane %v218, 1
  %v221 = vsel %vm197, %v216, %v220
  %v256 = vunpack.c.l.b16 %v152
  %v257 = vunpack.c.l.b16 %v153
  %v258 = vunpack.c.l.b16 %v154
  %v259 = vunpack.c.l.b16 %v155
  %v260 = vunpack.c.l.b16 %v156
  %v261 = vunpack.c.l.b16 %v157
  %v262 = vunpack.c.l.b16 %v158
  %v263 = vunpack.c.l.b16 %v159
  %v264 = vunpack.c.l.b16 %v160
  %v265 = vunpack.c.l.b16 %v161
  %v266 = vunpack.c.l.b16 %v162
  %v267 = vunpack.c.l.b16 %v163
  %v268 = vunpack.c.l.b16 %v164
  %v269 = vunpack.c.l.b16 %v165
  %v270 = vunpack.c.l.b16 %v166
  %v271 = vunpack.c.l.b16 %v167
  %v272 = vunpack.c.l.b16 %v168
  %v273 = vunpack.c.l.b16 %v169
  %v274 = vunpack.c.l.b16 %v170
  %v275 = vunpack.c.l.b16 %v171
  %v276 = vunpack.c.l.b16 %v172
  %v277 = vunpack.c.l.b16 %v173
  %v278 = vunpack.c.l.b16 %v174
  %v279 = vunpack.c.l.b16 %v175
  %v280 = vunpack.c.l.b16 %v176
  %v281 = vunpack.c.l.b16 %v177
  %v282 = vunpack.c.l.b16 %v178
  %v283 = vunpack.c.l.b16 %v179
  %v284 = vunpack.c.l.b16 %v180
  %v285 = vunpack.c.l.b16 %v181
  %v286 = vunpack.c.l.b16 %v182
  %v287 = vunpack.c.l.b16 %v183
  %v288 = vpack.c.b16 %v257, %v256
  %v289 = vpack.c.b16 %v259, %v258
  %v290 = vpack.c.b16 %v261, %v260
  %v291 = vpack.c.b16 %v263, %v262
  %v292 = vpack.c.b16 %v265, %v264
  %v293 = vpack.c.b16 %v267, %v266
  %v294 = vpack.c.b16 %v269, %v268
  %v295 = vpack.c.b16 %v271, %v270
  %v296 = vpack.c.b16 %v273, %v272
  %v297 = vpack.c.b16 %v275, %v274
  %v298 = vpack.c.b16 %v277, %v276
  %v299 = vpack.c.b16 %v279, %v278
  %v300 = vpack.c.b16 %v281, %v280
  %v301 = vpack.c.b16 %v283, %v282
  %v302 = vpack.c.b16 %v285, %v284
  %v303 = vpack.c.b16 %v287, %v286
  %320 = vmatpush.bf16.msra.mxu0 %v295
  %321 = vmatpush.bf16.msra.mxu0 %v294
  %322 = vmatpush.bf16.msra.mxu0 %v293
  %323 = vmatpush.bf16.msra.mxu0 %v292
  %324 = vmatpush.bf16.msra.mxu0 %v291
  %325 = vmatpush.bf16.msra.mxu0 %v290
  %326 = vmatpush.bf16.msra.mxu0 %v289
  %327 = vmatpush.bf16.msra.mxu0 %v288
  %328 = vmatmul.bf16.gmra.mxu0 %v209
  %v329 = vpop.f32.mrf.mxu0
  %v330 = vadd.f32 0.0, %v329
  %v331 = vpop.f32.mrf.mxu0
  %v332 = vadd.f32 0.0, %v331
  %333 = vdwg.mxu0
  %334 = vmatpush.bf16.msra.mxu0 %v303
  %335 = vmatpush.bf16.msra.mxu0 %v302
  %336 = vmatpush.bf16.msra.mxu0 %v301
  %337 = vmatpush.bf16.msra.mxu0 %v300
  %338 = vmatpush.bf16.msra.mxu0 %v299
  %339 = vmatpush.bf16.msra.mxu0 %v298
  %340 = vmatpush.bf16.msra.mxu0 %v297
  %341 = vmatpush.bf16.msra.mxu0 %v296
  %342 = vmatmul.bf16.gmra.mxu0 %v221
  %v343 = vpop.f32.mrf.mxu0
  %v344 = vadd.f32 %v330, %v343
  %v345 = vpop.f32.mrf.mxu0
  %v346 = vadd.f32 %v332, %v345
  %347 = vdwg.mxu0
  %v382 = vunpack.c.l.b16 %v118
  %v383 = vunpack.c.l.b16 %v119
  %v384 = vunpack.c.l.b16 %v120
  %v385 = vunpack.c.l.b16 %v121
  %v386 = vunpack.c.l.b16 %v122
  %v387 = vunpack.c.l.b16 %v123
  %v388 = vunpack.c.l.b16 %v124
  %v389 = vunpack.c.l.b16 %v125
  %v390 = vunpack.c.l.b16 %v126
  %v391 = vunpack.c.l.b16 %v127
  %v392 = vunpack.c.l.b16 %v128
  %v393 = vunpack.c.l.b16 %v129
  %v394 = vunpack.c.l.b16 %v130
  %v395 = vunpack.c.l.b16 %v131
  %v396 = vunpack.c.l.b16 %v132
  %v397 = vunpack.c.l.b16 %v133
  %v398 = vunpack.c.l.b16 %v134
  %v399 = vunpack.c.l.b16 %v135
  %v400 = vunpack.c.l.b16 %v136
  %v401 = vunpack.c.l.b16 %v137
  %v402 = vunpack.c.l.b16 %v138
  %v403 = vunpack.c.l.b16 %v139
  %v404 = vunpack.c.l.b16 %v140
  %v405 = vunpack.c.l.b16 %v141
  %v406 = vunpack.c.l.b16 %v142
  %v407 = vunpack.c.l.b16 %v143
  %v408 = vunpack.c.l.b16 %v144
  %v409 = vunpack.c.l.b16 %v145
  %v410 = vunpack.c.l.b16 %v146
  %v411 = vunpack.c.l.b16 %v147
  %v412 = vunpack.c.l.b16 %v148
  %v413 = vunpack.c.l.b16 %v149
  %v414 = vpack.c.b16 %v383, %v382
  %v415 = vpack.c.b16 %v385, %v384
  %v416 = vpack.c.b16 %v387, %v386
  %v417 = vpack.c.b16 %v389, %v388
  %v418 = vpack.c.b16 %v391, %v390
  %v419 = vpack.c.b16 %v393, %v392
  %v420 = vpack.c.b16 %v395, %v394
  %v421 = vpack.c.b16 %v397, %v396
  %v422 = vpack.c.b16 %v399, %v398
  %v423 = vpack.c.b16 %v401, %v400
  %v424 = vpack.c.b16 %v403, %v402
  %v425 = vpack.c.b16 %v405, %v404
  %v426 = vpack.c.b16 %v407, %v406
  %v427 = vpack.c.b16 %v409, %v408
  %v428 = vpack.c.b16 %v411, %v410
  %v429 = vpack.c.b16 %v413, %v412
  %446 = vmatpush.bf16.msra.mxu0 %v421
  %447 = vmatpush.bf16.msra.mxu0 %v420
  %448 = vmatpush.bf16.msra.mxu0 %v419
  %449 = vmatpush.bf16.msra.mxu0 %v418
  %450 = vmatpush.bf16.msra.mxu0 %v417
  %451 = vmatpush.bf16.msra.mxu0 %v416
  %452 = vmatpush.bf16.msra.mxu0 %v415
  %453 = vmatpush.bf16.msra.mxu0 %v414
  %454 = vmatmul.bf16.gmra.mxu0 %v193
  %v455 = vpop.f32.mrf.mxu0
  %v456 = vadd.f32 %v344, %v455
  %v457 = vpop.f32.mrf.mxu0
  %v458 = vadd.f32 %v346, %v457
  %459 = vdwg.mxu0
  %460 = vmatpush.bf16.msra.mxu0 %v429
  %461 = vmatpush.bf16.msra.mxu0 %v428
  %462 = vmatpush.bf16.msra.mxu0 %v427
  %463 = vmatpush.bf16.msra.mxu0 %v426
  %464 = vmatpush.bf16.msra.mxu0 %v425
  %465 = vmatpush.bf16.msra.mxu0 %v424
  %466 = vmatpush.bf16.msra.mxu0 %v423
  %467 = vmatpush.bf16.msra.mxu0 %v422
  %468 = vmatmul.bf16.gmra.mxu0 %v194
  %v469 = vpop.f32.mrf.mxu0
  %v470 = vadd.f32 %v456, %v469
  %v471 = vpop.f32.mrf.mxu0
  %v472 = vadd.f32 %v458, %v471
  %473 = vdwg.mxu0
  %v474 = vld [vmem:[#allocation2] sm:$0xee]
  %s475 = scalar_lea.vmem %s2, 256
  %v476 = vld [vmem:[%s475] sm:$0xf]
  %v477 = vld [vmem:[%s475 + $0x4] sm:$0xf]
  %v478 = vld [vmem:[%s475 + $0x8] sm:$0xf]
  %v479 = vld [vmem:[%s475 + $0xc] sm:$0xf]
  %v480 = vld [vmem:[%s475 + $0x10] sm:$0xf]
  %v481 = vld [vmem:[%s475 + $0x14] sm:$0xf]
  %v482 = vld [vmem:[%s475 + $0x18] sm:$0xf]
  %v483 = vld [vmem:[%s475 + $0x1c] sm:$0xf]
  %v484 = vld [vmem:[%s475 + $0x20] sm:$0xf]
  %v485 = vld [vmem:[%s475 + $0x24] sm:$0xf]
  %v486 = vld [vmem:[%s475 + $0x28] sm:$0xf]
  %v487 = vld [vmem:[%s475 + $0x2c] sm:$0xf]
  %v488 = vld [vmem:[%s475 + $0x30] sm:$0xf]
  %v489 = vld [vmem:[%s475 + $0x34] sm:$0xf]
  %v490 = vld [vmem:[%s475 + $0x38] sm:$0xf]
  %v491 = vld [vmem:[%s475 + $0x3c] sm:$0xf]
  %v492 = vld [vmem:[%s475 + $0x40] sm:$0xf]
  %v493 = vld [vmem:[%s475 + $0x44] sm:$0xf]
  %v494 = vld [vmem:[%s475 + $0x48] sm:$0xf]
  %v495 = vld [vmem:[%s475 + $0x4c] sm:$0xf]
  %v496 = vld [vmem:[%s475 + $0x50] sm:$0xf]
  %v497 = vld [vmem:[%s475 + $0x54] sm:$0xf]
  %v498 = vld [vmem:[%s475 + $0x58] sm:$0xf]
  %v499 = vld [vmem:[%s475 + $0x5c] sm:$0xf]
  %v500 = vld [vmem:[%s475 + $0x60] sm:$0xf]
  %v501 = vld [vmem:[%s475 + $0x64] sm:$0xf]
  %v502 = vld [vmem:[%s475 + $0x68] sm:$0xf]
  %v503 = vld [vmem:[%s475 + $0x6c] sm:$0xf]
  %v504 = vld [vmem:[%s475 + $0x70] sm:$0xf]
  %v505 = vld [vmem:[%s475 + $0x74] sm:$0xf]
  %v506 = vld [vmem:[%s475 + $0x78] sm:$0xf]
  %v507 = vld [vmem:[%s475 + $0x7c] sm:$0xf]
  %v509 = vunpack.c.l.b16 %v474
  %v510 = vunpack.c.h.b16 %v474
  %v511 = vpack.c.b16 %v189, %v509
  %v512 = vpack.c.b16 %v190, %v510
  %vm513 = vcmask 1046528
  %v514 = vrot.slane %v511, 1
  %v515 = vrot.slane %v195, 1
  %v516 = vsel %vm513, %v514, %v515
  %v517 = vrot.slane %v512, 1
  %v518 = vrot.slane %v196, 1
  %v519 = vsel %vm513, %v517, %v518
  %v554 = vunpack.c.l.b16 %v476
  %v555 = vunpack.c.l.b16 %v477
  %v556 = vunpack.c.l.b16 %v478
  %v557 = vunpack.c.l.b16 %v479
  %v558 = vunpack.c.l.b16 %v480
  %v559 = vunpack.c.l.b16 %v481
  %v560 = vunpack.c.l.b16 %v482
  %v561 = vunpack.c.l.b16 %v483
  %v562 = vunpack.c.l.b16 %v484
  %v563 = vunpack.c.l.b16 %v485
  %v564 = vunpack.c.l.b16 %v486
  %v565 = vunpack.c.l.b16 %v487
  %v566 = vunpack.c.l.b16 %v488
  %v567 = vunpack.c.l.b16 %v489
  %v568 = vunpack.c.l.b16 %v490
  %v569 = vunpack.c.l.b16 %v491
  %v570 = vunpack.c.l.b16 %v492
  %v571 = vunpack.c.l.b16 %v493
  %v572 = vunpack.c.l.b16 %v494
  %v573 = vunpack.c.l.b16 %v495
  %v574 = vunpack.c.l.b16 %v496
  %v575 = vunpack.c.l.b16 %v497
  %v576 = vunpack.c.l.b16 %v498
  %v577 = vunpack.c.l.b16 %v499
  %v578 = vunpack.c.l.b16 %v500
  %v579 = vunpack.c.l.b16 %v501
  %v580 = vunpack.c.l.b16 %v502
  %v581 = vunpack.c.l.b16 %v503
  %v582 = vunpack.c.l.b16 %v504
  %v583 = vunpack.c.l.b16 %v505
  %v584 = vunpack.c.l.b16 %v506
  %v585 = vunpack.c.l.b16 %v507
  %v586 = vpack.c.b16 %v555, %v554
  %v587 = vpack.c.b16 %v557, %v556
  %v588 = vpack.c.b16 %v559, %v558
  %v589 = vpack.c.b16 %v561, %v560
  %v590 = vpack.c.b16 %v563, %v562
  %v591 = vpack.c.b16 %v565, %v564
  %v592 = vpack.c.b16 %v567, %v566
  %v593 = vpack.c.b16 %v569, %v568
  %v594 = vpack.c.b16 %v571, %v570
  %v595 = vpack.c.b16 %v573, %v572
  %v596 = vpack.c.b16 %v575, %v574
  %v597 = vpack.c.b16 %v577, %v576
  %v598 = vpack.c.b16 %v579, %v578
  %v599 = vpack.c.b16 %v581, %v580
  %v600 = vpack.c.b16 %v583, %v582
  %v601 = vpack.c.b16 %v585, %v584
  %618 = vmatpush.bf16.msra.mxu0 %v593
  %619 = vmatpush.bf16.msra.mxu0 %v592
  %620 = vmatpush.bf16.msra.mxu0 %v591
  %621 = vmatpush.bf16.msra.mxu0 %v590
  %622 = vmatpush.bf16.msra.mxu0 %v589
  %623 = vmatpush.bf16.msra.mxu0 %v588
  %624 = vmatpush.bf16.msra.mxu0 %v587
  %625 = vmatpush.bf16.msra.mxu0 %v586
  %626 = vmatmul.bf16.gmra.mxu0 %v516
  %v627 = vpop.f32.mrf.mxu0
  %v628 = vadd.f32 0.0, %v627
  %v629 = vpop.f32.mrf.mxu0
  %v630 = vadd.f32 0.0, %v629
  %631 = vdwg.mxu0
  %632 = vmatpush.bf16.msra.mxu0 %v601
  %633 = vmatpush.bf16.msra.mxu0 %v600
  %634 = vmatpush.bf16.msra.mxu0 %v599
  %635 = vmatpush.bf16.msra.mxu0 %v598
  %636 = vmatpush.bf16.msra.mxu0 %v597
  %637 = vmatpush.bf16.msra.mxu0 %v596
  %638 = vmatpush.bf16.msra.mxu0 %v595
  %639 = vmatpush.bf16.msra.mxu0 %v594
  %640 = vmatmul.bf16.gmra.mxu0 %v519
  %v641 = vpop.f32.mrf.mxu0
  %v642 = vadd.f32 %v628, %v641
  %v643 = vpop.f32.mrf.mxu0
  %v644 = vadd.f32 %v630, %v643
  %645 = vdwg.mxu0
  %v646 = vadd.f32 %v470, %v642
  %v647 = vadd.f32 %v472, %v644
  %v648 = vld [vmem:[%s3] sm:$0x1]
  %v650 = vperm.slane %v648, 0
  %v652 = vadd.f32 %v646, %v650
  %v653 = vadd.f32 %v647, %v650
  %v654 = vmax.f32 %v652, 0.0
  %v655 = vmax.f32 %v653, 0.0
  %v656 = vadd.f32 %v50, %v654
  %v657 = vadd.f32 %v51, %v655
  %658 = vst [vmem:[%s6] sm:$0xff] %v656
  %659 = vst [vmem:[%s6 + $0x8] sm:$0xff] %v657
  %v660 = vpack.c.bf16 %v654, %v654
  %v661 = vpack.c.bf16 %v655, %v655
  %v663 = vshrl.u32 %v660, 16
  %v665 = vrot.slane %v663, 7
  %v666 = vshll.u32 %v660, 16
  %v668 = vor.u32 %v665, %v666
  %v669 = vrot.slane %v665, 4
  %v671 = vshrl.u32 %v661, 16
  %v673 = vrot.slane %v671, 7
  %v674 = vshll.u32 %v661, 16
  %v676 = vor.u32 %v673, %v674
  %v677 = vsel %vm55, %v669, %v676
  %v678 = vrot.slane %v673, 4
  %v682 = vld [vmem:[#allocation3] sm:$0xf]
  %v683 = vsel %vm77, %v668, %v682
  %684 = vst [vmem:[#allocation3] sm:$0xf] %v683
  %685 = vst [vmem:[#allocation3 + $0x4] sm:$0xf] %v677
  %v686 = vld [vmem:[#allocation3 + $0x8] sm:$0x1]
  %v687 = vsel %vm28, %v678, %v686
  %688 = vst [vmem:[#allocation3 + $0x8] sm:$0x1] %v687
  %v689 = vld [vmem:[#allocation3] sm:$0xf]
  %v690 = vld [vmem:[#allocation3 + $0x4] sm:$0xf]
  %v691 = vld [vmem:[%s4] sm:$0xf]
  %v692 = vld [vmem:[%s4 + $0x4] sm:$0xf]
  %v693 = vld [vmem:[%s4 + $0x8] sm:$0xf]
  %v694 = vld [vmem:[%s4 + $0xc] sm:$0xf]
  %v695 = vld [vmem:[%s4 + $0x10] sm:$0xf]
  %v696 = vld [vmem:[%s4 + $0x14] sm:$0xf]
  %v697 = vld [vmem:[%s4 + $0x18] sm:$0xf]
  %v698 = vld [vmem:[%s4 + $0x1c] sm:$0xf]
  %v699 = vld [vmem:[%s4 + $0x20] sm:$0xf]
  %v700 = vld [vmem:[%s4 + $0x24] sm:$0xf]
  %v701 = vld [vmem:[%s4 + $0x28] sm:$0xf]
  %v702 = vld [vmem:[%s4 + $0x2c] sm:$0xf]
  %v703 = vld [vmem:[%s4 + $0x30] sm:$0xf]
  %v704 = vld [vmem:[%s4 + $0x34] sm:$0xf]
  %v705 = vld [vmem:[%s4 + $0x38] sm:$0xf]
  %v706 = vld [vmem:[%s4 + $0x3c] sm:$0xf]
  %v707 = vld [vmem:[#allocation3 + $0x8] sm:$0x1]
  %s708 = scalar_lea.vmem %s4, 64
  %v709 = vld [vmem:[%s708] sm:$0xf]
  %v710 = vld [vmem:[%s708 + $0x4] sm:$0xf]
  %v711 = vld [vmem:[%s708 + $0x8] sm:$0xf]
  %v712 = vld [vmem:[%s708 + $0xc] sm:$0xf]
  %v713 = vld [vmem:[%s708 + $0x10] sm:$0xf]
  %v714 = vld [vmem:[%s708 + $0x14] sm:$0xf]
  %v715 = vld [vmem:[%s708 + $0x18] sm:$0xf]
  %v716 = vld [vmem:[%s708 + $0x1c] sm:$0xf]
  %v717 = vld [vmem:[%s708 + $0x20] sm:$0xf]
  %v718 = vld [vmem:[%s708 + $0x24] sm:$0xf]
  %v719 = vld [vmem:[%s708 + $0x28] sm:$0xf]
  %v720 = vld [vmem:[%s708 + $0x2c] sm:$0xf]
  %v721 = vld [vmem:[%s708 + $0x30] sm:$0xf]
  %v722 = vld [vmem:[%s708 + $0x34] sm:$0xf]
  %v723 = vld [vmem:[%s708 + $0x38] sm:$0xf]
  %v724 = vld [vmem:[%s708 + $0x3c] sm:$0xf]
  %v728 = vunpack.c.l.b16 %v689
  %v729 = vunpack.c.l.b16 %v690
  %v730 = vunpack.c.l.b16 %v707
  %v731 = vpack.c.b16 %v729, %v728
  %v732 = vpack.c.b16 %v730, %v730
  %v734 = vshrl.u32 %v731, 16
  %v736 = vshll.u32 %v731, 16
  %v738 = vrot.slane %v736, 1
  %v739 = vor.u32 %v734, %v738
  %v741 = vshll.u32 %v732, 16
  %v743 = vrot.slane %v741, 1
  %v744 = vsel %vm197, %v739, %v743
  %v762 = vunpack.c.l.b16 %v709
  %v763 = vunpack.c.l.b16 %v710
  %v764 = vunpack.c.l.b16 %v711
  %v765 = vunpack.c.l.b16 %v712
  %v766 = vunpack.c.l.b16 %v713
  %v767 = vunpack.c.l.b16 %v714
  %v768 = vunpack.c.l.b16 %v715
  %v769 = vunpack.c.l.b16 %v716
  %v770 = vunpack.c.l.b16 %v717
  %v771 = vunpack.c.l.b16 %v718
  %v772 = vunpack.c.l.b16 %v719
  %v773 = vunpack.c.l.b16 %v720
  %v774 = vunpack.c.l.b16 %v721
  %v775 = vunpack.c.l.b16 %v722
  %v776 = vunpack.c.l.b16 %v723
  %v777 = vunpack.c.l.b16 %v724
  %v778 = vpack.c.b16 %v763, %v762
  %v779 = vpack.c.b16 %v765, %v764
  %v780 = vpack.c.b16 %v767, %v766
  %v781 = vpack.c.b16 %v769, %v768
  %v782 = vpack.c.b16 %v771, %v770
  %v783 = vpack.c.b16 %v773, %v772
  %v784 = vpack.c.b16 %v775, %v774
  %v785 = vpack.c.b16 %v777, %v776
  %794 = vmatpush.bf16.msra.mxu0 %v785
  %795 = vmatpush.bf16.msra.mxu0 %v784
  %796 = vmatpush.bf16.msra.mxu0 %v783
  %797 = vmatpush.bf16.msra.mxu0 %v782
  %798 = vmatpush.bf16.msra.mxu0 %v781
  %799 = vmatpush.bf16.msra.mxu0 %v780
  %800 = vmatpush.bf16.msra.mxu0 %v779
  %801 = vmatpush.bf16.msra.mxu0 %v778
  %802 = vmatmul.bf16.gmra.mxu0 %v744
  %v803 = vpop.f32.mrf.mxu0
  %v804 = vadd.f32 0.0, %v803
  %v805 = vpop.f32.mrf.mxu0
  %v806 = vadd.f32 0.0, %v805
  %807 = vdwg.mxu0
  %v825 = vunpack.c.l.b16 %v691
  %v826 = vunpack.c.l.b16 %v692
  %v827 = vunpack.c.l.b16 %v693
  %v828 = vunpack.c.l.b16 %v694
  %v829 = vunpack.c.l.b16 %v695
  %v830 = vunpack.c.l.b16 %v696
  %v831 = vunpack.c.l.b16 %v697
  %v832 = vunpack.c.l.b16 %v698
  %v833 = vunpack.c.l.b16 %v699
  %v834 = vunpack.c.l.b16 %v700
  %v835 = vunpack.c.l.b16 %v701
  %v836 = vunpack.c.l.b16 %v702
  %v837 = vunpack.c.l.b16 %v703
  %v838 = vunpack.c.l.b16 %v704
  %v839 = vunpack.c.l.b16 %v705
  %v840 = vunpack.c.l.b16 %v706
  %v841 = vpack.c.b16 %v826, %v825
  %v842 = vpack.c.b16 %v828, %v827
  %v843 = vpack.c.b16 %v830, %v829
  %v844 = vpack.c.b16 %v832, %v831
  %v845 = vpack.c.b16 %v834, %v833
  %v846 = vpack.c.b16 %v836, %v835
  %v847 = vpack.c.b16 %v838, %v837
  %v848 = vpack.c.b16 %v840, %v839
  %857 = vmatpush.bf16.msra.mxu0 %v848
  %858 = vmatpush.bf16.msra.mxu0 %v847
  %859 = vmatpush.bf16.msra.mxu0 %v846
  %860 = vmatpush.bf16.msra.mxu0 %v845
  %861 = vmatpush.bf16.msra.mxu0 %v844
  %862 = vmatpush.bf16.msra.mxu0 %v843
  %863 = vmatpush.bf16.msra.mxu0 %v842
  %864 = vmatpush.bf16.msra.mxu0 %v841
  %865 = vmatmul.bf16.gmra.mxu0 %v731
  %v866 = vpop.f32.mrf.mxu0
  %v867 = vadd.f32 %v804, %v866
  %v868 = vpop.f32.mrf.mxu0
  %v869 = vadd.f32 %v806, %v868
  %870 = vdwg.mxu0
  %v871 = vld [vmem:[#allocation3] sm:$0xe]
  %s872 = scalar_lea.vmem %s4, 128
  %v873 = vld [vmem:[%s872] sm:$0xf]
  %v874 = vld [vmem:[%s872 + $0x4] sm:$0xf]
  %v875 = vld [vmem:[%s872 + $0x8] sm:$0xf]
  %v876 = vld [vmem:[%s872 + $0xc] sm:$0xf]
  %v877 = vld [vmem:[%s872 + $0x10] sm:$0xf]
  %v878 = vld [vmem:[%s872 + $0x14] sm:$0xf]
  %v879 = vld [vmem:[%s872 + $0x18] sm:$0xf]
  %v880 = vld [vmem:[%s872 + $0x1c] sm:$0xf]
  %v881 = vld [vmem:[%s872 + $0x20] sm:$0xf]
  %v882 = vld [vmem:[%s872 + $0x24] sm:$0xf]
  %v883 = vld [vmem:[%s872 + $0x28] sm:$0xf]
  %v884 = vld [vmem:[%s872 + $0x2c] sm:$0xf]
  %v885 = vld [vmem:[%s872 + $0x30] sm:$0xf]
  %v886 = vld [vmem:[%s872 + $0x34] sm:$0xf]
  %v887 = vld [vmem:[%s872 + $0x38] sm:$0xf]
  %v888 = vld [vmem:[%s872 + $0x3c] sm:$0xf]
  %v890 = vunpack.c.l.b16 %v871
  %v891 = vpack.c.b16 %v729, %v890
  %v892 = vrot.slane %v891, 1
  %v893 = vrot.slane %v732, 1
  %v894 = vsel %vm513, %v892, %v893
  %v912 = vunpack.c.l.b16 %v873
  %v913 = vunpack.c.l.b16 %v874
  %v914 = vunpack.c.l.b16 %v875
  %v915 = vunpack.c.l.b16 %v876
  %v916 = vunpack.c.l.b16 %v877
  %v917 = vunpack.c.l.b16 %v878
  %v918 = vunpack.c.l.b16 %v879
  %v919 = vunpack.c.l.b16 %v880
  %v920 = vunpack.c.l.b16 %v881
  %v921 = vunpack.c.l.b16 %v882
  %v922 = vunpack.c.l.b16 %v883
  %v923 = vunpack.c.l.b16 %v884
  %v924 = vunpack.c.l.b16 %v885
  %v925 = vunpack.c.l.b16 %v886
  %v926 = vunpack.c.l.b16 %v887
  %v927 = vunpack.c.l.b16 %v888
  %v928 = vpack.c.b16 %v913, %v912
  %v929 = vpack.c.b16 %v915, %v914
  %v930 = vpack.c.b16 %v917, %v916
  %v931 = vpack.c.b16 %v919, %v918
  %v932 = vpack.c.b16 %v921, %v920
  %v933 = vpack.c.b16 %v923, %v922
  %v934 = vpack.c.b16 %v925, %v924
  %v935 = vpack.c.b16 %v927, %v926
  %944 = vmatpush.bf16.msra.mxu0 %v935
  %945 = vmatpush.bf16.msra.mxu0 %v934
  %946 = vmatpush.bf16.msra.mxu0 %v933
  %947 = vmatpush.bf16.msra.mxu0 %v932
  %948 = vmatpush.bf16.msra.mxu0 %v931
  %949 = vmatpush.bf16.msra.mxu0 %v930
  %950 = vmatpush.bf16.msra.mxu0 %v929
  %951 = vmatpush.bf16.msra.mxu0 %v928
  %952 = vmatmul.bf16.gmra.mxu0 %v894
  %v953 = vpop.f32.mrf.mxu0
  %v954 = vadd.f32 0.0, %v953
  %v955 = vpop.f32.mrf.mxu0
  %v956 = vadd.f32 0.0, %v955
  %957 = vdwg.mxu0
  %v958 = vadd.f32 %v867, %v954
  %v959 = vadd.f32 %v869, %v956
  %v960 = vld [vmem:[%s5] sm:$0x1]
  %v962 = vperm.slane %v960, 0
  %v964 = vadd.f32 %v958, %v962
  %v965 = vadd.f32 %v959, %v962
  %v966 = vmax.f32 %v964, 0.0
  %v967 = vmax.f32 %v965, 0.0
  %968 = vst [vmem:[%s7] sm:$0xff] %v966
  %969 = vst [vmem:[%s7 + $0x8] sm:$0xff] %v967
  %s970 = scalar_lea.vmem %s0, 16
  %v971 = vld [vmem:[%s970] sm:$0xff]
  %v972 = vld [vmem:[%s970 + $0x8] sm:$0xff]
  %v973 = vpack.c.bf16 %v971, %v971
  %v974 = vpack.c.bf16 %v972, %v972
  %v976 = vshrl.u32 %v973, 16
  %v978 = vrot.slane %v976, 7
  %v979 = vshll.u32 %v973, 16
  %v981 = vor.u32 %v978, %v979
  %v982 = vrot.slane %v978, 4
  %v984 = vshrl.u32 %v974, 16
  %v986 = vrot.slane %v984, 7
  %v987 = vshll.u32 %v974, 16
  %v989 = vor.u32 %v986, %v987
  %v990 = vsel %vm55, %v982, %v989
  %v991 = vrot.slane %v986, 4
  %v995 = vld [vmem:[#allocation2] sm:$0xf]
  %v996 = vsel %vm77, %v981, %v995
  %997 = vst [vmem:[#allocation2] sm:$0xf] %v996
  %998 = vst [vmem:[#allocation2 + $0x8] sm:$0xf] %v990
  %v999 = vld [vmem:[#allocation2 + $0x10] sm:$0x1]
  %v1000 = vsel %vm28, %v991, %v999
  %1001 = vst [vmem:[#allocation2 + $0x10] sm:$0x1] %v1000
  %s1002 = scalar_lea.vmem %s1, 16
  %v1003 = vld [vmem:[%s1002] sm:$0xff]
  %v1004 = vld [vmem:[%s1002 + $0x8] sm:$0xff]
  %v1005 = vpack.c.bf16 %v1003, %v1003
  %v1006 = vpack.c.bf16 %v1004, %v1004
  %v1008 = vshrl.u32 %v1005, 16
  %v1010 = vrot.slane %v1008, 7
  %v1011 = vshll.u32 %v1005, 16
  %v1013 = vor.u32 %v1010, %v1011
  %v1014 = vrot.slane %v1010, 4
  %v1016 = vshrl.u32 %v1006, 16
  %v1018 = vrot.slane %v1016, 7
  %v1019 = vshll.u32 %v1006, 16
  %v1021 = vor.u32 %v1018, %v1019
  %v1022 = vsel %vm55, %v1014, %v1021
  %v1023 = vrot.slane %v1018, 4
  %v1027 = vld [vmem:[#allocation2 + $0x4] sm:$0xf]
  %v1028 = vsel %vm77, %v1013, %v1027
  %1029 = vst [vmem:[#allocation2 + $0x4] sm:$0xf] %v1028
  %1030 = vst [vmem:[#allocation2 + $0xc] sm:$0xf] %v1022
  %v1031 = vld [vmem:[#allocation2 + $0x14] sm:$0x1]
  %v1032 = vsel %vm28, %v1023, %v1031
  %1033 = vst [vmem:[#allocation2 + $0x14] sm:$0x1] %v1032
  %v1034 = vld [vmem:[#allocation2] sm:$0xff]
  %v1035 = vld [vmem:[#allocation2 + $0x8] sm:$0xff]
  %v1036 = vld [vmem:[%s2] sm:$0xf]
  %v1037 = vld [vmem:[%s2 + $0x4] sm:$0xf]
  %v1038 = vld [vmem:[%s2 + $0x8] sm:$0xf]
  %v1039 = vld [vmem:[%s2 + $0xc] sm:$0xf]
  %v1040 = vld [vmem:[%s2 + $0x10] sm:$0xf]
  %v1041 = vld [vmem:[%s2 + $0x14] sm:$0xf]
  %v1042 = vld [vmem:[%s2 + $0x18] sm:$0xf]
  %v1043 = vld [vmem:[%s2 + $0x1c] sm:$0xf]
  %v1044 = vld [vmem:[%s2 + $0x20] sm:$0xf]
  %v1045 = vld [vmem:[%s2 + $0x24] sm:$0xf]
  %v1046 = vld [vmem:[%s2 + $0x28] sm:$0xf]
  %v1047 = vld [vmem:[%s2 + $0x2c] sm:$0xf]
  %v1048 = vld [vmem:[%s2 + $0x30] sm:$0xf]
  %v1049 = vld [vmem:[%s2 + $0x34] sm:$0xf]
  %v1050 = vld [vmem:[%s2 + $0x38] sm:$0xf]
  %v1051 = vld [vmem:[%s2 + $0x3c] sm:$0xf]
  %v1052 = vld [vmem:[%s2 + $0x40] sm:$0xf]
  %v1053 = vld [vmem:[%s2 + $0x44] sm:$0xf]
  %v1054 = vld [vmem:[%s2 + $0x48] sm:$0xf]
  %v1055 = vld [vmem:[%s2 + $0x4c] sm:$0xf]
  %v1056 = vld [vmem:[%s2 + $0x50] sm:$0xf]
  %v1057 = vld [vmem:[%s2 + $0x54] sm:$0xf]
  %v1058 = vld [vmem:[%s2 + $0x58] sm:$0xf]
  %v1059 = vld [vmem:[%s2 + $0x5c] sm:$0xf]
  %v1060 = vld [vmem:[%s2 + $0x60] sm:$0xf]
  %v1061 = vld [vmem:[%s2 + $0x64] sm:$0xf]
  %v1062 = vld [vmem:[%s2 + $0x68] sm:$0xf]
  %v1063 = vld [vmem:[%s2 + $0x6c] sm:$0xf]
  %v1064 = vld [vmem:[%s2 + $0x70] sm:$0xf]
  %v1065 = vld [vmem:[%s2 + $0x74] sm:$0xf]
  %v1066 = vld [vmem:[%s2 + $0x78] sm:$0xf]
  %v1067 = vld [vmem:[%s2 + $0x7c] sm:$0xf]
  %v1068 = vld [vmem:[#allocation2 + $0x10] sm:$0x11]
  %v1069 = vld [vmem:[%s151] sm:$0xf]
  %v1070 = vld [vmem:[%s151 + $0x4] sm:$0xf]
  %v1071 = vld [vmem:[%s151 + $0x8] sm:$0xf]
  %v1072 = vld [vmem:[%s151 + $0xc] sm:$0xf]
  %v1073 = vld [vmem:[%s151 + $0x10] sm:$0xf]
  %v1074 = vld [vmem:[%s151 + $0x14] sm:$0xf]
  %v1075 = vld [vmem:[%s151 + $0x18] sm:$0xf]
  %v1076 = vld [vmem:[%s151 + $0x1c] sm:$0xf]
  %v1077 = vld [vmem:[%s151 + $0x20] sm:$0xf]
  %v1078 = vld [vmem:[%s151 + $0x24] sm:$0xf]
  %v1079 = vld [vmem:[%s151 + $0x28] sm:$0xf]
  %v1080 = vld [vmem:[%s151 + $0x2c] sm:$0xf]
  %v1081 = vld [vmem:[%s151 + $0x30] sm:$0xf]
  %v1082 = vld [vmem:[%s151 + $0x34] sm:$0xf]
  %v1083 = vld [vmem:[%s151 + $0x38] sm:$0xf]
  %v1084 = vld [vmem:[%s151 + $0x3c] sm:$0xf]
  %v1085 = vld [vmem:[%s151 + $0x40] sm:$0xf]
  %v1086 = vld [vmem:[%s151 + $0x44] sm:$0xf]
  %v1087 = vld [vmem:[%s151 + $0x48] sm:$0xf]
  %v1088 = vld [vmem:[%s151 + $0x4c] sm:$0xf]
  %v1089 = vld [vmem:[%s151 + $0x50] sm:$0xf]
  %v1090 = vld [vmem:[%s151 + $0x54] sm:$0xf]
  %v1091 = vld [vmem:[%s151 + $0x58] sm:$0xf]
  %v1092 = vld [vmem:[%s151 + $0x5c] sm:$0xf]
  %v1093 = vld [vmem:[%s151 + $0x60] sm:$0xf]
  %v1094 = vld [vmem:[%s151 + $0x64] sm:$0xf]
  %v1095 = vld [vmem:[%s151 + $0x68] sm:$0xf]
  %v1096 = vld [vmem:[%s151 + $0x6c] sm:$0xf]
  %v1097 = vld [vmem:[%s151 + $0x70] sm:$0xf]
  %v1098 = vld [vmem:[%s151 + $0x74] sm:$0xf]
  %v1099 = vld [vmem:[%s151 + $0x78] sm:$0xf]
  %v1100 = vld [vmem:[%s151 + $0x7c] sm:$0xf]
  %v1104 = vunpack.c.l.b16 %v1034
  %v1105 = vunpack.c.h.b16 %v1034
  %v1106 = vunpack.c.l.b16 %v1035
  %v1107 = vunpack.c.h.b16 %v1035
  %v1108 = vunpack.c.l.b16 %v1068
  %v1109 = vunpack.c.h.b16 %v1068
  %v1110 = vpack.c.b16 %v1106, %v1104
  %v1111 = vpack.c.b16 %v1107, %v1105
  %v1112 = vpack.c.b16 %v1108, %v1108
  %v1113 = vpack.c.b16 %v1109, %v1109
  %v1115 = vshrl.u32 %v1110, 16
  %v1117 = vshll.u32 %v1110, 16
  %v1119 = vrot.slane %v1117, 1
  %v1120 = vor.u32 %v1115, %v1119
  %v1122 = vshll.u32 %v1112, 16
  %v1124 = vrot.slane %v1122, 1
  %v1125 = vsel %vm197, %v1120, %v1124
  %v1127 = vshrl.u32 %v1111, 16
  %v1129 = vshll.u32 %v1111, 16
  %v1131 = vrot.slane %v1129, 1
  %v1132 = vor.u32 %v1127, %v1131
  %v1134 = vshll.u32 %v1113, 16
  %v1136 = vrot.slane %v1134, 1
  %v1137 = vsel %vm197, %v1132, %v1136
  %v1172 = vunpack.c.l.b16 %v1069
  %v1173 = vunpack.c.l.b16 %v1070
  %v1174 = vunpack.c.l.b16 %v1071
  %v1175 = vunpack.c.l.b16 %v1072
  %v1176 = vunpack.c.l.b16 %v1073
  %v1177 = vunpack.c.l.b16 %v1074
  %v1178 = vunpack.c.l.b16 %v1075
  %v1179 = vunpack.c.l.b16 %v1076
  %v1180 = vunpack.c.l.b16 %v1077
  %v1181 = vunpack.c.l.b16 %v1078
  %v1182 = vunpack.c.l.b16 %v1079
  %v1183 = vunpack.c.l.b16 %v1080
  %v1184 = vunpack.c.l.b16 %v1081
  %v1185 = vunpack.c.l.b16 %v1082
  %v1186 = vunpack.c.l.b16 %v1083
  %v1187 = vunpack.c.l.b16 %v1084
  %v1188 = vunpack.c.l.b16 %v1085
  %v1189 = vunpack.c.l.b16 %v1086
  %v1190 = vunpack.c.l.b16 %v1087
  %v1191 = vunpack.c.l.b16 %v1088
  %v1192 = vunpack.c.l.b16 %v1089
  %v1193 = vunpack.c.l.b16 %v1090
  %v1194 = vunpack.c.l.b16 %v1091
  %v1195 = vunpack.c.l.b16 %v1092
  %v1196 = vunpack.c.l.b16 %v1093
  %v1197 = vunpack.c.l.b16 %v1094
  %v1198 = vunpack.c.l.b16 %v1095
  %v1199 = vunpack.c.l.b16 %v1096
  %v1200 = vunpack.c.l.b16 %v1097
  %v1201 = vunpack.c.l.b16 %v1098
  %v1202 = vunpack.c.l.b16 %v1099
  %v1203 = vunpack.c.l.b16 %v1100
  %v1204 = vpack.c.b16 %v1173, %v1172
  %v1205 = vpack.c.b16 %v1175, %v1174
  %v1206 = vpack.c.b16 %v1177, %v1176
  %v1207 = vpack.c.b16 %v1179, %v1178
  %v1208 = vpack.c.b16 %v1181, %v1180
  %v1209 = vpack.c.b16 %v1183, %v1182
  %v1210 = vpack.c.b16 %v1185, %v1184
  %v1211 = vpack.c.b16 %v1187, %v1186
  %v1212 = vpack.c.b16 %v1189, %v1188
  %v1213 = vpack.c.b16 %v1191, %v1190
  %v1214 = vpack.c.b16 %v1193, %v1192
  %v1215 = vpack.c.b16 %v1195, %v1194
  %v1216 = vpack.c.b16 %v1197, %v1196
  %v1217 = vpack.c.b16 %v1199, %v1198
  %v1218 = vpack.c.b16 %v1201, %v1200
  %v1219 = vpack.c.b16 %v1203, %v1202
  %1236 = vmatpush.bf16.msra.mxu0 %v1211
  %1237 = vmatpush.bf16.msra.mxu0 %v1210
  %1238 = vmatpush.bf16.msra.mxu0 %v1209
  %1239 = vmatpush.bf16.msra.mxu0 %v1208
  %1240 = vmatpush.bf16.msra.mxu0 %v1207
  %1241 = vmatpush.bf16.msra.mxu0 %v1206
  %1242 = vmatpush.bf16.msra.mxu0 %v1205
  %1243 = vmatpush.bf16.msra.mxu0 %v1204
  %1244 = vmatmul.bf16.gmra.mxu0 %v1125
  %v1245 = vpop.f32.mrf.mxu0
  %v1246 = vadd.f32 0.0, %v1245
  %v1247 = vpop.f32.mrf.mxu0
  %v1248 = vadd.f32 0.0, %v1247
  %1249 = vdwg.mxu0
  %1250 = vmatpush.bf16.msra.mxu0 %v1219
  %1251 = vmatpush.bf16.msra.mxu0 %v1218
  %1252 = vmatpush.bf16.msra.mxu0 %v1217
  %1253 = vmatpush.bf16.msra.mxu0 %v1216
  %1254 = vmatpush.bf16.msra.mxu0 %v1215
  %1255 = vmatpush.bf16.msra.mxu0 %v1214
  %1256 = vmatpush.bf16.msra.mxu0 %v1213
  %1257 = vmatpush.bf16.msra.mxu0 %v1212
  %1258 = vmatmul.bf16.gmra.mxu0 %v1137
  %v1259 = vpop.f32.mrf.mxu0
  %v1260 = vadd.f32 %v1246, %v1259
  %v1261 = vpop.f32.mrf.mxu0
  %v1262 = vadd.f32 %v1248, %v1261
  %1263 = vdwg.mxu0
  %v1298 = vunpack.c.l.b16 %v1036
  %v1299 = vunpack.c.l.b16 %v1037
  %v1300 = vunpack.c.l.b16 %v1038
  %v1301 = vunpack.c.l.b16 %v1039
  %v1302 = vunpack.c.l.b16 %v1040
  %v1303 = vunpack.c.l.b16 %v1041
  %v1304 = vunpack.c.l.b16 %v1042
  %v1305 = vunpack.c.l.b16 %v1043
  %v1306 = vunpack.c.l.b16 %v1044
  %v1307 = vunpack.c.l.b16 %v1045
  %v1308 = vunpack.c.l.b16 %v1046
  %v1309 = vunpack.c.l.b16 %v1047
  %v1310 = vunpack.c.l.b16 %v1048
  %v1311 = vunpack.c.l.b16 %v1049
  %v1312 = vunpack.c.l.b16 %v1050
  %v1313 = vunpack.c.l.b16 %v1051
  %v1314 = vunpack.c.l.b16 %v1052
  %v1315 = vunpack.c.l.b16 %v1053
  %v1316 = vunpack.c.l.b16 %v1054
  %v1317 = vunpack.c.l.b16 %v1055
  %v1318 = vunpack.c.l.b16 %v1056
  %v1319 = vunpack.c.l.b16 %v1057
  %v1320 = vunpack.c.l.b16 %v1058
  %v1321 = vunpack.c.l.b16 %v1059
  %v1322 = vunpack.c.l.b16 %v1060
  %v1323 = vunpack.c.l.b16 %v1061
  %v1324 = vunpack.c.l.b16 %v1062
  %v1325 = vunpack.c.l.b16 %v1063
  %v1326 = vunpack.c.l.b16 %v1064
  %v1327 = vunpack.c.l.b16 %v1065
  %v1328 = vunpack.c.l.b16 %v1066
  %v1329 = vunpack.c.l.b16 %v1067
  %v1330 = vpack.c.b16 %v1299, %v1298
  %v1331 = vpack.c.b16 %v1301, %v1300
  %v1332 = vpack.c.b16 %v1303, %v1302
  %v1333 = vpack.c.b16 %v1305, %v1304
  %v1334 = vpack.c.b16 %v1307, %v1306
  %v1335 = vpack.c.b16 %v1309, %v1308
  %v1336 = vpack.c.b16 %v1311, %v1310
  %v1337 = vpack.c.b16 %v1313, %v1312
  %v1338 = vpack.c.b16 %v1315, %v1314
  %v1339 = vpack.c.b16 %v1317, %v1316
  %v1340 = vpack.c.b16 %v1319, %v1318
  %v1341 = vpack.c.b16 %v1321, %v1320
  %v1342 = vpack.c.b16 %v1323, %v1322
  %v1343 = vpack.c.b16 %v1325, %v1324
  %v1344 = vpack.c.b16 %v1327, %v1326
  %v1345 = vpack.c.b16 %v1329, %v1328
  %1362 = vmatpush.bf16.msra.mxu0 %v1337
  %1363 = vmatpush.bf16.msra.mxu0 %v1336
  %1364 = vmatpush.bf16.msra.mxu0 %v1335
  %1365 = vmatpush.bf16.msra.mxu0 %v1334
  %1366 = vmatpush.bf16.msra.mxu0 %v1333
  %1367 = vmatpush.bf16.msra.mxu0 %v1332
  %1368 = vmatpush.bf16.msra.mxu0 %v1331
  %1369 = vmatpush.bf16.msra.mxu0 %v1330
  %1370 = vmatmul.bf16.gmra.mxu0 %v1110
  %v1371 = vpop.f32.mrf.mxu0
  %v1372 = vadd.f32 %v1260, %v1371
  %v1373 = vpop.f32.mrf.mxu0
  %v1374 = vadd.f32 %v1262, %v1373
  %1375 = vdwg.mxu0
  %1376 = vmatpush.bf16.msra.mxu0 %v1345
  %1377 = vmatpush.bf16.msra.mxu0 %v1344
  %1378 = vmatpush.bf16.msra.mxu0 %v1343
  %1379 = vmatpush.bf16.msra.mxu0 %v1342
  %1380 = vmatpush.bf16.msra.mxu0 %v1341
  %1381 = vmatpush.bf16.msra.mxu0 %v1340
  %1382 = vmatpush.bf16.msra.mxu0 %v1339
  %1383 = vmatpush.bf16.msra.mxu0 %v1338
  %1384 = vmatmul.bf16.gmra.mxu0 %v1111
  %v1385 = vpop.f32.mrf.mxu0
  %v1386 = vadd.f32 %v1372, %v1385
  %v1387 = vpop.f32.mrf.mxu0
  %v1388 = vadd.f32 %v1374, %v1387
  %1389 = vdwg.mxu0
  %v1390 = vld [vmem:[#allocation2] sm:$0xee]
  %v1391 = vld [vmem:[%s475] sm:$0xf]
  %v1392 = vld [vmem:[%s475 + $0x4] sm:$0xf]
  %v1393 = vld [vmem:[%s475 + $0x8] sm:$0xf]
  %v1394 = vld [vmem:[%s475 + $0xc] sm:$0xf]
  %v1395 = vld [vmem:[%s475 + $0x10] sm:$0xf]
  %v1396 = vld [vmem:[%s475 + $0x14] sm:$0xf]
  %v1397 = vld [vmem:[%s475 + $0x18] sm:$0xf]
  %v1398 = vld [vmem:[%s475 + $0x1c] sm:$0xf]
  %v1399 = vld [vmem:[%s475 + $0x20] sm:$0xf]
  %v1400 = vld [vmem:[%s475 + $0x24] sm:$0xf]
  %v1401 = vld [vmem:[%s475 + $0x28] sm:$0xf]
  %v1402 = vld [vmem:[%s475 + $0x2c] sm:$0xf]
  %v1403 = vld [vmem:[%s475 + $0x30] sm:$0xf]
  %v1404 = vld [vmem:[%s475 + $0x34] sm:$0xf]
  %v1405 = vld [vmem:[%s475 + $0x38] sm:$0xf]
  %v1406 = vld [vmem:[%s475 + $0x3c] sm:$0xf]
  %v1407 = vld [vmem:[%s475 + $0x40] sm:$0xf]
  %v1408 = vld [vmem:[%s475 + $0x44] sm:$0xf]
  %v1409 = vld [vmem:[%s475 + $0x48] sm:$0xf]
  %v1410 = vld [vmem:[%s475 + $0x4c] sm:$0xf]
  %v1411 = vld [vmem:[%s475 + $0x50] sm:$0xf]
  %v1412 = vld [vmem:[%s475 + $0x54] sm:$0xf]
  %v1413 = vld [vmem:[%s475 + $0x58] sm:$0xf]
  %v1414 = vld [vmem:[%s475 + $0x5c] sm:$0xf]
  %v1415 = vld [vmem:[%s475 + $0x60] sm:$0xf]
  %v1416 = vld [vmem:[%s475 + $0x64] sm:$0xf]
  %v1417 = vld [vmem:[%s475 + $0x68] sm:$0xf]
  %v1418 = vld [vmem:[%s475 + $0x6c] sm:$0xf]
  %v1419 = vld [vmem:[%s475 + $0x70] sm:$0xf]
  %v1420 = vld [vmem:[%s475 + $0x74] sm:$0xf]
  %v1421 = vld [vmem:[%s475 + $0x78] sm:$0xf]
  %v1422 = vld [vmem:[%s475 + $0x7c] sm:$0xf]
  %v1424 = vunpack.c.l.b16 %v1390
  %v1425 = vunpack.c.h.b16 %v1390
  %v1426 = vpack.c.b16 %v1106, %v1424
  %v1427 = vpack.c.b16 %v1107, %v1425
  %v1428 = vrot.slane %v1426, 1
  %v1429 = vrot.slane %v1112, 1
  %v1430 = vsel %vm513, %v1428, %v1429
  %v1431 = vrot.slane %v1427, 1
  %v1432 = vrot.slane %v1113, 1
  %v1433 = vsel %vm513, %v1431, %v1432
  %v1468 = vunpack.c.l.b16 %v1391
  %v1469 = vunpack.c.l.b16 %v1392
  %v1470 = vunpack.c.l.b16 %v1393
  %v1471 = vunpack.c.l.b16 %v1394
  %v1472 = vunpack.c.l.b16 %v1395
  %v1473 = vunpack.c.l.b16 %v1396
  %v1474 = vunpack.c.l.b16 %v1397
  %v1475 = vunpack.c.l.b16 %v1398
  %v1476 = vunpack.c.l.b16 %v1399
  %v1477 = vunpack.c.l.b16 %v1400
  %v1478 = vunpack.c.l.b16 %v1401
  %v1479 = vunpack.c.l.b16 %v1402
  %v1480 = vunpack.c.l.b16 %v1403
  %v1481 = vunpack.c.l.b16 %v1404
  %v1482 = vunpack.c.l.b16 %v1405
  %v1483 = vunpack.c.l.b16 %v1406
  %v1484 = vunpack.c.l.b16 %v1407
  %v1485 = vunpack.c.l.b16 %v1408
  %v1486 = vunpack.c.l.b16 %v1409
  %v1487 = vunpack.c.l.b16 %v1410
  %v1488 = vunpack.c.l.b16 %v1411
  %v1489 = vunpack.c.l.b16 %v1412
  %v1490 = vunpack.c.l.b16 %v1413
  %v1491 = vunpack.c.l.b16 %v1414
  %v1492 = vunpack.c.l.b16 %v1415
  %v1493 = vunpack.c.l.b16 %v1416
  %v1494 = vunpack.c.l.b16 %v1417
  %v1495 = vunpack.c.l.b16 %v1418
  %v1496 = vunpack.c.l.b16 %v1419
  %v1497 = vunpack.c.l.b16 %v1420
  %v1498 = vunpack.c.l.b16 %v1421
  %v1499 = vunpack.c.l.b16 %v1422
  %v1500 = vpack.c.b16 %v1469, %v1468
  %v1501 = vpack.c.b16 %v1471, %v1470
  %v1502 = vpack.c.b16 %v1473, %v1472
  %v1503 = vpack.c.b16 %v1475, %v1474
  %v1504 = vpack.c.b16 %v1477, %v1476
  %v1505 = vpack.c.b16 %v1479, %v1478
  %v1506 = vpack.c.b16 %v1481, %v1480
  %v1507 = vpack.c.b16 %v1483, %v1482
  %v1508 = vpack.c.b16 %v1485, %v1484
  %v1509 = vpack.c.b16 %v1487, %v1486
  %v1510 = vpack.c.b16 %v1489, %v1488
  %v1511 = vpack.c.b16 %v1491, %v1490
  %v1512 = vpack.c.b16 %v1493, %v1492
  %v1513 = vpack.c.b16 %v1495, %v1494
  %v1514 = vpack.c.b16 %v1497, %v1496
  %v1515 = vpack.c.b16 %v1499, %v1498
  %1532 = vmatpush.bf16.msra.mxu0 %v1507
  %1533 = vmatpush.bf16.msra.mxu0 %v1506
  %1534 = vmatpush.bf16.msra.mxu0 %v1505
  %1535 = vmatpush.bf16.msra.mxu0 %v1504
  %1536 = vmatpush.bf16.msra.mxu0 %v1503
  %1537 = vmatpush.bf16.msra.mxu0 %v1502
  %1538 = vmatpush.bf16.msra.mxu0 %v1501
  %1539 = vmatpush.bf16.msra.mxu0 %v1500
  %1540 = vmatmul.bf16.gmra.mxu0 %v1430
  %v1541 = vpop.f32.mrf.mxu0
  %v1542 = vadd.f32 0.0, %v1541
  %v1543 = vpop.f32.mrf.mxu0
  %v1544 = vadd.f32 0.0, %v1543
  %1545 = vdwg.mxu0
  %1546 = vmatpush.bf16.msra.mxu0 %v1515
  %1547 = vmatpush.bf16.msra.mxu0 %v1514
  %1548 = vmatpush.bf16.msra.mxu0 %v1513
  %1549 = vmatpush.bf16.msra.mxu0 %v1512
  %1550 = vmatpush.bf16.msra.mxu0 %v1511
  %1551 = vmatpush.bf16.msra.mxu0 %v1510
  %1552 = vmatpush.bf16.msra.mxu0 %v1509
  %1553 = vmatpush.bf16.msra.mxu0 %v1508
  %1554 = vmatmul.bf16.gmra.mxu0 %v1433
  %v1555 = vpop.f32.mrf.mxu0
  %v1556 = vadd.f32 %v1542, %v1555
  %v1557 = vpop.f32.mrf.mxu0
  %v1558 = vadd.f32 %v1544, %v1557
  %1559 = vdwg.mxu0
  %v1560 = vadd.f32 %v1386, %v1556
  %v1561 = vadd.f32 %v1388, %v1558
  %v1562 = vld [vmem:[%s3] sm:$0x1]
  %v1564 = vperm.slane %v1562, 0
  %v1566 = vadd.f32 %v1560, %v1564
  %v1567 = vadd.f32 %v1561, %v1564
  %v1568 = vmax.f32 %v1566, 0.0
  %v1569 = vmax.f32 %v1567, 0.0
  %v1570 = vadd.f32 %v971, %v1568
  %v1571 = vadd.f32 %v972, %v1569
  %s1572 = scalar_lea.vmem %s6, 16
  %1573 = vst [vmem:[%s1572] sm:$0xff] %v1570
  %1574 = vst [vmem:[%s1572 + $0x8] sm:$0xff] %v1571
  %v1575 = vpack.c.bf16 %v1568, %v1568
  %v1576 = vpack.c.bf16 %v1569, %v1569
  %v1578 = vshrl.u32 %v1575, 16
  %v1580 = vrot.slane %v1578, 7
  %v1581 = vshll.u32 %v1575, 16
  %v1583 = vor.u32 %v1580, %v1581
  %v1584 = vrot.slane %v1580, 4
  %v1586 = vshrl.u32 %v1576, 16
  %v1588 = vrot.slane %v1586, 7
  %v1589 = vshll.u32 %v1576, 16
  %v1591 = vor.u32 %v1588, %v1589
  %v1592 = vsel %vm55, %v1584, %v1591
  %v1593 = vrot.slane %v1588, 4
  %v1597 = vld [vmem:[#allocation3] sm:$0xf]
  %v1598 = vsel %vm77, %v1583, %v1597
  %1599 = vst [vmem:[#allocation3] sm:$0xf] %v1598
  %1600 = vst [vmem:[#allocation3 + $0x4] sm:$0xf] %v1592
  %v1601 = vld [vmem:[#allocation3 + $0x8] sm:$0x1]
  %v1602 = vsel %vm28, %v1593, %v1601
  %1603 = vst [vmem:[#allocation3 + $0x8] sm:$0x1] %v1602
  %v1604 = vld [vmem:[#allocation3] sm:$0xf]
  %v1605 = vld [vmem:[#allocation3 + $0x4] sm:$0xf]
  %v1606 = vld [vmem:[%s4] sm:$0xf]
  %v1607 = vld [vmem:[%s4 + $0x4] sm:$0xf]
  %v1608 = vld [vmem:[%s4 + $0x8] sm:$0xf]
  %v1609 = vld [vmem:[%s4 + $0xc] sm:$0xf]
  %v1610 = vld [vmem:[%s4 + $0x10] sm:$0xf]
  %v1611 = vld [vmem:[%s4 + $0x14] sm:$0xf]
  %v1612 = vld [vmem:[%s4 + $0x18] sm:$0xf]
  %v1613 = vld [vmem:[%s4 + $0x1c] sm:$0xf]
  %v1614 = vld [vmem:[%s4 + $0x20] sm:$0xf]
  %v1615 = vld [vmem:[%s4 + $0x24] sm:$0xf]
  %v1616 = vld [vmem:[%s4 + $0x28] sm:$0xf]
  %v1617 = vld [vmem:[%s4 + $0x2c] sm:$0xf]
  %v1618 = vld [vmem:[%s4 + $0x30] sm:$0xf]
  %v1619 = vld [vmem:[%s4 + $0x34] sm:$0xf]
  %v1620 = vld [vmem:[%s4 + $0x38] sm:$0xf]
  %v1621 = vld [vmem:[%s4 + $0x3c] sm:$0xf]
  %v1622 = vld [vmem:[#allocation3 + $0x8] sm:$0x1]
  %v1623 = vld [vmem:[%s708] sm:$0xf]
  %v1624 = vld [vmem:[%s708 + $0x4] sm:$0xf]
  %v1625 = vld [vmem:[%s708 + $0x8] sm:$0xf]
  %v1626 = vld [vmem:[%s708 + $0xc] sm:$0xf]
  %v1627 = vld [vmem:[%s708 + $0x10] sm:$0xf]
  %v1628 = vld [vmem:[%s708 + $0x14] sm:$0xf]
  %v1629 = vld [vmem:[%s708 + $0x18] sm:$0xf]
  %v1630 = vld [vmem:[%s708 + $0x1c] sm:$0xf]
  %v1631 = vld [vmem:[%s708 + $0x20] sm:$0xf]
  %v1632 = vld [vmem:[%s708 + $0x24] sm:$0xf]
  %v1633 = vld [vmem:[%s708 + $0x28] sm:$0xf]
  %v1634 = vld [vmem:[%s708 + $0x2c] sm:$0xf]
  %v1635 = vld [vmem:[%s708 + $0x30] sm:$0xf]
  %v1636 = vld [vmem:[%s708 + $0x34] sm:$0xf]
  %v1637 = vld [vmem:[%s708 + $0x38] sm:$0xf]
  %v1638 = vld [vmem:[%s708 + $0x3c] sm:$0xf]
  %v1642 = vunpack.c.l.b16 %v1604
  %v1643 = vunpack.c.l.b16 %v1605
  %v1644 = vunpack.c.l.b16 %v1622
  %v1645 = vpack.c.b16 %v1643, %v1642
  %v1646 = vpack.c.b16 %v1644, %v1644
  %v1648 = vshrl.u32 %v1645, 16
  %v1650 = vshll.u32 %v1645, 16
  %v1652 = vrot.slane %v1650, 1
  %v1653 = vor.u32 %v1648, %v1652
  %v1655 = vshll.u32 %v1646, 16
  %v1657 = vrot.slane %v1655, 1
  %v1658 = vsel %vm197, %v1653, %v1657
  %v1676 = vunpack.c.l.b16 %v1623
  %v1677 = vunpack.c.l.b16 %v1624
  %v1678 = vunpack.c.l.b16 %v1625
  %v1679 = vunpack.c.l.b16 %v1626
  %v1680 = vunpack.c.l.b16 %v1627
  %v1681 = vunpack.c.l.b16 %v1628
  %v1682 = vunpack.c.l.b16 %v1629
  %v1683 = vunpack.c.l.b16 %v1630
  %v1684 = vunpack.c.l.b16 %v1631
  %v1685 = vunpack.c.l.b16 %v1632
  %v1686 = vunpack.c.l.b16 %v1633
  %v1687 = vunpack.c.l.b16 %v1634
  %v1688 = vunpack.c.l.b16 %v1635
  %v1689 = vunpack.c.l.b16 %v1636
  %v1690 = vunpack.c.l.b16 %v1637
  %v1691 = vunpack.c.l.b16 %v1638
  %v1692 = vpack.c.b16 %v1677, %v1676
  %v1693 = vpack.c.b16 %v1679, %v1678
  %v1694 = vpack.c.b16 %v1681, %v1680
  %v1695 = vpack.c.b16 %v1683, %v1682
  %v1696 = vpack.c.b16 %v1685, %v1684
  %v1697 = vpack.c.b16 %v1687, %v1686
  %v1698 = vpack.c.b16 %v1689, %v1688
  %v1699 = vpack.c.b16 %v1691, %v1690
  %1708 = vmatpush.bf16.msra.mxu0 %v1699
  %1709 = vmatpush.bf16.msra.mxu0 %v1698
  %1710 = vmatpush.bf16.msra.mxu0 %v1697
  %1711 = vmatpush.bf16.msra.mxu0 %v1696
  %1712 = vmatpush.bf16.msra.mxu0 %v1695
  %1713 = vmatpush.bf16.msra.mxu0 %v1694
  %1714 = vmatpush.bf16.msra.mxu0 %v1693
  %1715 = vmatpush.bf16.msra.mxu0 %v1692
  %1716 = vmatmul.bf16.gmra.mxu0 %v1658
  %v1717 = vpop.f32.mrf.mxu0
  %v1718 = vadd.f32 0.0, %v1717
  %v1719 = vpop.f32.mrf.mxu0
  %v1720 = vadd.f32 0.0, %v1719
  %1721 = vdwg.mxu0
  %v1739 = vunpack.c.l.b16 %v1606
  %v1740 = vunpack.c.l.b16 %v1607
  %v1741 = vunpack.c.l.b16 %v1608
  %v1742 = vunpack.c.l.b16 %v1609
  %v1743 = vunpack.c.l.b16 %v1610
  %v1744 = vunpack.c.l.b16 %v1611
  %v1745 = vunpack.c.l.b16 %v1612
  %v1746 = vunpack.c.l.b16 %v1613
  %v1747 = vunpack.c.l.b16 %v1614
  %v1748 = vunpack.c.l.b16 %v1615
  %v1749 = vunpack.c.l.b16 %v1616
  %v1750 = vunpack.c.l.b16 %v1617
  %v1751 = vunpack.c.l.b16 %v1618
  %v1752 = vunpack.c.l.b16 %v1619
  %v1753 = vunpack.c.l.b16 %v1620
  %v1754 = vunpack.c.l.b16 %v1621
  %v1755 = vpack.c.b16 %v1740, %v1739
  %v1756 = vpack.c.b16 %v1742, %v1741
  %v1757 = vpack.c.b16 %v1744, %v1743
  %v1758 = vpack.c.b16 %v1746, %v1745
  %v1759 = vpack.c.b16 %v1748, %v1747
  %v1760 = vpack.c.b16 %v1750, %v1749
  %v1761 = vpack.c.b16 %v1752, %v1751
  %v1762 = vpack.c.b16 %v1754, %v1753
  %1771 = vmatpush.bf16.msra.mxu0 %v1762
  %1772 = vmatpush.bf16.msra.mxu0 %v1761
  %1773 = vmatpush.bf16.msra.mxu0 %v1760
  %1774 = vmatpush.bf16.msra.mxu0 %v1759
  %1775 = vmatpush.bf16.msra.mxu0 %v1758
  %1776 = vmatpush.bf16.msra.mxu0 %v1757
  %1777 = vmatpush.bf16.msra.mxu0 %v1756
  %1778 = vmatpush.bf16.msra.mxu0 %v1755
  %1779 = vmatmul.bf16.gmra.mxu0 %v1645
  %v1780 = vpop.f32.mrf.mxu0
  %v1781 = vadd.f32 %v1718, %v1780
  %v1782 = vpop.f32.mrf.mxu0
  %v1783 = vadd.f32 %v1720, %v1782
  %1784 = vdwg.mxu0
  %v1785 = vld [vmem:[#allocation3] sm:$0xe]
  %v1786 = vld [vmem:[%s872] sm:$0xf]
  %v1787 = vld [vmem:[%s872 + $0x4] sm:$0xf]
  %v1788 = vld [vmem:[%s872 + $0x8] sm:$0xf]
  %v1789 = vld [vmem:[%s872 + $0xc] sm:$0xf]
  %v1790 = vld [vmem:[%s872 + $0x10] sm:$0xf]
  %v1791 = vld [vmem:[%s872 + $0x14] sm:$0xf]
  %v1792 = vld [vmem:[%s872 + $0x18] sm:$0xf]
  %v1793 = vld [vmem:[%s872 + $0x1c] sm:$0xf]
  %v1794 = vld [vmem:[%s872 + $0x20] sm:$0xf]
  %v1795 = vld [vmem:[%s872 + $0x24] sm:$0xf]
  %v1796 = vld [vmem:[%s872 + $0x28] sm:$0xf]
  %v1797 = vld [vmem:[%s872 + $0x2c] sm:$0xf]
  %v1798 = vld [vmem:[%s872 + $0x30] sm:$0xf]
  %v1799 = vld [vmem:[%s872 + $0x34] sm:$0xf]
  %v1800 = vld [vmem:[%s872 + $0x38] sm:$0xf]
  %v1801 = vld [vmem:[%s872 + $0x3c] sm:$0xf]
  %v1803 = vunpack.c.l.b16 %v1785
  %v1804 = vpack.c.b16 %v1643, %v1803
  %v1805 = vrot.slane %v1804, 1
  %v1806 = vrot.slane %v1646, 1
  %v1807 = vsel %vm513, %v1805, %v1806
  %v1825 = vunpack.c.l.b16 %v1786
  %v1826 = vunpack.c.l.b16 %v1787
  %v1827 = vunpack.c.l.b16 %v1788
  %v1828 = vunpack.c.l.b16 %v1789
  %v1829 = vunpack.c.l.b16 %v1790
  %v1830 = vunpack.c.l.b16 %v1791
  %v1831 = vunpack.c.l.b16 %v1792
  %v1832 = vunpack.c.l.b16 %v1793
  %v1833 = vunpack.c.l.b16 %v1794
  %v1834 = vunpack.c.l.b16 %v1795
  %v1835 = vunpack.c.l.b16 %v1796
  %v1836 = vunpack.c.l.b16 %v1797
  %v1837 = vunpack.c.l.b16 %v1798
  %v1838 = vunpack.c.l.b16 %v1799
  %v1839 = vunpack.c.l.b16 %v1800
  %v1840 = vunpack.c.l.b16 %v1801
  %v1841 = vpack.c.b16 %v1826, %v1825
  %v1842 = vpack.c.b16 %v1828, %v1827
  %v1843 = vpack.c.b16 %v1830, %v1829
  %v1844 = vpack.c.b16 %v1832, %v1831
  %v1845 = vpack.c.b16 %v1834, %v1833
  %v1846 = vpack.c.b16 %v1836, %v1835
  %v1847 = vpack.c.b16 %v1838, %v1837
  %v1848 = vpack.c.b16 %v1840, %v1839
  %1857 = vmatpush.bf16.msra.mxu0 %v1848
  %1858 = vmatpush.bf16.msra.mxu0 %v1847
  %1859 = vmatpush.bf16.msra.mxu0 %v1846
  %1860 = vmatpush.bf16.msra.mxu0 %v1845
  %1861 = vmatpush.bf16.msra.mxu0 %v1844
  %1862 = vmatpush.bf16.msra.mxu0 %v1843
  %1863 = vmatpush.bf16.msra.mxu0 %v1842
  %1864 = vmatpush.bf16.msra.mxu0 %v1841
  %1865 = vmatmul.bf16.gmra.mxu0 %v1807
  %v1866 = vpop.f32.mrf.mxu0
  %v1867 = vadd.f32 0.0, %v1866
  %v1868 = vpop.f32.mrf.mxu0
  %v1869 = vadd.f32 0.0, %v1868
  %1870 = vdwg.mxu0
  %v1871 = vadd.f32 %v1781, %v1867
  %v1872 = vadd.f32 %v1783, %v1869
  %v1873 = vld [vmem:[%s5] sm:$0x1]
  %v1875 = vperm.slane %v1873, 0
  %v1877 = vadd.f32 %v1871, %v1875
  %v1878 = vadd.f32 %v1872, %v1875
  %v1879 = vmax.f32 %v1877, 0.0
  %v1880 = vmax.f32 %v1878, 0.0
  %s1881 = scalar_lea.vmem %s7, 16
  %1882 = vst [vmem:[%s1881] sm:$0xff] %v1879
  %1883 = vst [vmem:[%s1881 + $0x8] sm:$0xff] %v1880
  // Predicated region
  $region26: #{decoder_layer.1} parent=0 // pred_check
    _
  $region27: #{decoder_layer.1} parent=0 // pred_check_branch
    %1885 = sbr.rel (0) target = $region29
  $region28: #{decoder_layer.1} parent=0 // pred_region
    _
  $region29: #{decoder_layer.1} parent=0 // pred_fallthru
    _
  // Predicated region
  $region30: #{decoder_layer.1} parent=0 // pred_check
    _
  $region31: #{decoder_layer.1} parent=0 // pred_check_branch
    %1887 = sbr.rel (0) target = $region33
  $region32: #{decoder_layer.1} parent=0 // pred_region
    _
  $region33: #{decoder_layer.1} parent=0 // pred_fallthru
    _
  // Predicated region
  $region34: #{decoder_layer.1} parent=0 // pred_check
    _
  $region35: #{decoder_layer.1} parent=0 // pred_check_branch
    %1889 = sbr.rel (0) target = $region37
  $region36: #{decoder_layer.1} parent=0 // pred_region
    _
  $region37: #{decoder_layer.1} parent=0 // pred_fallthru
    _
  // Predicated region
  $region38: #{decoder_layer.1} parent=0 // pred_check
    _
  $region39: #{decoder_layer.1} parent=0 // pred_check_branch
    %1891 = sbr.rel (0) target = $region41
  $region40: #{decoder_layer.1} parent=0 // pred_region
    _
  $region41: #{decoder_layer.1} parent=0 // pred_fallthru
    _

</llo_original>
